<compile_context>
chip_gen: v7x
topology: tpu7x:2x2x1
jax: 0.10.0
libtpu: 0.0.40
codegen_flags: <defaults>
</compile_context>

<pallas_src>
import math

import jax
import jax.numpy as jnp
from jax.experimental import pallas as pl
from jax.experimental.pallas import tpu as pltpu

# Small synthetic shapes (lane-dense hidden / ffn).
B, S, H, F, VOCAB = 2, 8, 128, 512, 50
LANE = 128
EPS = 1e-12                      # BERT LayerNorm eps

# Batches per grid step.  Keep grid = B // BT >= 2 so both of v7x's
# TensorCores get work; on v5e/v6e (single TC) BT could grow to B.
BT = max(1, B // 2)
assert B % BT == 0
GRID = B // BT

# Row layout of the packed (VEC_ROWS, 128) f32 parameter buffer.
ROW_BQ, ROW_BK, ROW_BV, ROW_BO = 0, 1, 2, 3
ROW_LN1G, ROW_LN1B = 4, 5
ROW_B2, ROW_LN2G, ROW_LN2B = 6, 7, 8
ROW_WR, ROW_BR = 9, 10
VEC_ROWS = 16


def _layernorm(x, g, b):
    mu = jnp.mean(x, axis=-1, keepdims=True)
    var = jnp.mean((x - mu) ** 2, axis=-1, keepdims=True)
    return (x - mu) * jax.lax.rsqrt(var + EPS) * g + b


def finbert_regressor_kernel(x_ref, mask_ref, wqkv_ref, wo_ref, w1_ref,
                             w2_ref, vec_ref, b1_ref, out_ref):
    # Per-step tile: x (BT, S, H) f32, mask (BT, 1, S) f32 in {0, 1}.
    # Token-parallel matmuls run on a flattened (BT*S, H) slab (more MXU
    # rows per pass); only the attention itself is batched over BT.
    x = x_ref[...].reshape(BT * S, H)
    x_bf = x.astype(jnp.bfloat16)

    # --- fused QKV projection: one MXU pass over the (H, 3H) weight ---
    qkv = jnp.dot(x_bf, wqkv_ref[...], preferred_element_type=jnp.float32)
    q = (qkv[:, 0 * H:1 * H] + vec_ref[ROW_BQ:ROW_BQ + 1, :]).reshape(BT, S, H)
    k = (qkv[:, 1 * H:2 * H] + vec_ref[ROW_BK:ROW_BK + 1, :]).reshape(BT, S, H)
    v = (qkv[:, 2 * H:3 * H] + vec_ref[ROW_BV:ROW_BV + 1, :]).reshape(BT, S, H)

    # --- single-head attention (batched over BT, scores/softmax in f32) ---
    scores = jnp.einsum('bqd,bkd->bqk', q.astype(jnp.bfloat16),
                        k.astype(jnp.bfloat16),
                        preferred_element_type=jnp.float32)        # (BT,S,S)
    # Additive mask built in-kernel from the tiny (BT,1,S) {0,1} mask.
    scores = scores * (1.0 / math.sqrt(H)) + (1.0 - mask_ref[...]) * (-1e9)

    m = jnp.max(scores, axis=-1, keepdims=True)
    p = jnp.exp(scores - m)
    # approx reciprocal uses the EUP slot; ~1e-4 rel. err vs exact divide.
    attn = p * pl.reciprocal(jnp.sum(p, axis=-1, keepdims=True), approx=True)

    ctx = jnp.einsum('bqk,bkd->bqd', attn.astype(jnp.bfloat16),
                     v.astype(jnp.bfloat16),
                     preferred_element_type=jnp.float32)           # (BT,S,H)
    attn_out = jnp.dot(ctx.reshape(BT * S, H).astype(jnp.bfloat16),
                       wo_ref[...], preferred_element_type=jnp.float32)
    attn_out = attn_out + vec_ref[ROW_BO:ROW_BO + 1, :]

    h1 = _layernorm(x + attn_out,
                    vec_ref[ROW_LN1G:ROW_LN1G + 1, :],
                    vec_ref[ROW_LN1B:ROW_LN1B + 1, :])

    # --- feed-forward ---
    hid = jnp.dot(h1.astype(jnp.bfloat16), w1_ref[...],
                  preferred_element_type=jnp.float32) + b1_ref[...]
    # TODO(synk): BERT/FinBERT use exact erf GELU; tanh approximation kept.
    hid = jax.nn.gelu(hid, approximate=True)
    ffn = jnp.dot(hid.astype(jnp.bfloat16), w2_ref[...],
                  preferred_element_type=jnp.float32)
    ffn = ffn + vec_ref[ROW_B2:ROW_B2 + 1, :]

    h2 = _layernorm(h1 + ffn,
                    vec_ref[ROW_LN2G:ROW_LN2G + 1, :],
                    vec_ref[ROW_LN2B:ROW_LN2B + 1, :])   # hidden_states[-1]

    # --- CLS rows + regressor head: VPU multiply + lane reduce (no MXU) ---
    cls = h2.reshape(BT, S, H)[:, 0, :]                            # (BT, H)
    score = jnp.sum(cls * vec_ref[ROW_WR:ROW_WR + 1, :],
                    axis=-1, keepdims=True)                        # (BT, 1)
    score = score + vec_ref[ROW_BR:ROW_BR + 1, 0:1]
    # Lane-dense (BT, 1, 128) output slab; wrapper reads lane 0.
    out_ref[...] = jnp.broadcast_to(score[:, :, None], out_ref.shape)


def init_params(key):
    ks = jax.random.split(key, 9)

    def n(k, shape, scale=0.02):
        return (scale * jax.random.normal(k, shape)).astype(jnp.float32)

    zeros = lambda shape: jnp.zeros(shape, jnp.float32)
    ones = lambda shape: jnp.ones(shape, jnp.float32)

    return dict(
        word_emb=n(ks[0], (VOCAB, H)),
        pos_emb=n(ks[1], (S, H)),
        wq=n(ks[2], (H, H)), bq=zeros((1, H)),
        wk=n(ks[3], (H, H)), bk=zeros((1, H)),
        wv=n(ks[4], (H, H)), bv=zeros((1, H)),
        wo=n(ks[5], (H, H)), bo=zeros((1, H)),
        ln1_g=ones((1, H)), ln1_b=zeros((1, H)),
        w1=n(ks[6], (H, F)), b1=zeros((1, F)),
        w2=n(ks[7], (F, H)), b2=zeros((1, H)),
        ln2_g=ones((1, H)), ln2_b=zeros((1, H)),
        wr=n(ks[8], (1, H)), br=zeros((1, 1)),
    )


def pack_params(params):
    """One-time packing of weights into kernel-ready, lane-dense buffers.

    Hoisted out of the per-call forward so the jitted step only runs the
    embedding gather and the pallas_call (no per-step concat/cast/pad ops).
    """
    bf = jnp.bfloat16
    # Fused QKV weight, bf16 MXU operands.
    wqkv = jnp.concatenate(
        [params['wq'], params['wk'], params['wv']], axis=1).astype(bf)  # (H,3H)
    # Pack every (1,H)/(1,1) vector plus the regressor weight row into one
    # (16, 128) f32 buffer -> a single tiny resident tile.
    br_row = jnp.broadcast_to(params['br'], (1, LANE))
    vecs = jnp.concatenate([
        params['bq'], params['bk'], params['bv'], params['bo'],
        params['ln1_g'], params['ln1_b'],
        params['b2'], params['ln2_g'], params['ln2_b'],
        params['wr'],                       # regressor weight as a (1,H) row
        br_row,
        jnp.zeros((VEC_ROWS - 11, LANE), jnp.float32),
    ], axis=0)                                                      # (16,128)
    return dict(
        word_emb=params['word_emb'], pos_emb=params['pos_emb'],
        wqkv=wqkv, wo=params['wo'].astype(bf),
        w1=params['w1'].astype(bf), w2=params['w2'].astype(bf),
        vecs=vecs, b1=params['b1'],
    )


@jax.jit
def finbert_regressor_forward(input_ids, attention_mask, packed):
    # Embedding lookup is glue (gather) in plain JAX, fused under jit.
    x = (packed['word_emb'][input_ids]
         + packed['pos_emb'][None, :, :]).astype(jnp.float32)      # (B, S, H)
    # Tiny (B,1,S) {0,1} mask; the -1e9 additive bias is built in-kernel so
    # no (B,S,S) bias array is ever materialised or DMA'd.
    mask = attention_mask.astype(jnp.float32)[:, None, :]          # (B, 1, S)

    out = pl.pallas_call(
        finbert_regressor_kernel,
        out_shape=jax.ShapeDtypeStruct((B, 1, LANE), jnp.float32),
        grid=(GRID,),
        in_specs=[
            pl.BlockSpec((BT, S, H), lambda b: (b, 0, 0)),          # x
            pl.BlockSpec((BT, 1, S), lambda b: (b, 0, 0)),          # mask
            # Resident weights (constant index_maps -> DMA'd once, reused).
            # TODO(synk): at real FinBERT size mark these pl.Buffered(1) and
            # stream per-layer weights instead of keeping them resident.
            pl.BlockSpec((H, 3 * H), lambda b: (0, 0)),             # wqkv
            pl.BlockSpec((H, H), lambda b: (0, 0)),                 # wo
            pl.BlockSpec((H, F), lambda b: (0, 0)),                 # w1
            pl.BlockSpec((F, H), lambda b: (0, 0)),                 # w2
            pl.BlockSpec((VEC_ROWS, LANE), lambda b: (0, 0)),       # packed vecs
            pl.BlockSpec((1, F), lambda b: (0, 0)),                 # b1
        ],
        out_specs=pl.BlockSpec((BT, 1, LANE), lambda b: (b, 0, 0)),
        compiler_params=pltpu.CompilerParams(
            dimension_semantics=("parallel",)),
    )(x, mask, packed['wqkv'], packed['wo'], packed['w1'], packed['w2'],
      packed['vecs'], packed['b1'])

    # score lives in lane 0 of the lane-dense output slab -> (B,)
    return out[:, 0, 0]


if __name__ == "__main__":
    key = jax.random.PRNGKey(0)
    k_params, k_ids = jax.random.split(key)

    params = init_params(k_params)
    packed = pack_params(params)          # one-time weight packing (hoisted)

    input_ids = jax.random.randint(k_ids, (B, S), 0, VOCAB, dtype=jnp.int32)
    attention_mask = jnp.array(
        [[1, 1, 1, 1, 1, 1, 1, 1],
         [1, 1, 1, 1, 1, 0, 0, 0]], dtype=jnp.int32)

    out = finbert_regressor_forward(input_ids, attention_mask, packed)
    out = jax.block_until_ready(out)
    assert out.shape == (B,), out.shape
    print("KERNEL_OK")
</pallas_src>

<mosaic_0001>
module attributes {stable_mosaic.version = 11 : i64} {
  func.func @finbert_regressor_kernel(%arg0: i32, %arg1: memref<1x8x128xf32, #tpu.memory_space<vmem>>, %arg2: memref<1x1x8xf32, #tpu.memory_space<vmem>>, %arg3: memref<128x384xbf16, #tpu.memory_space<vmem>>, %arg4: memref<128x128xbf16, #tpu.memory_space<vmem>>, %arg5: memref<128x512xbf16, #tpu.memory_space<vmem>>, %arg6: memref<512x128xbf16, #tpu.memory_space<vmem>>, %arg7: memref<16x128xf32, #tpu.memory_space<vmem>>, %arg8: memref<1x512xf32, #tpu.memory_space<vmem>>, %arg9: memref<1x1x128xf32, #tpu.memory_space<vmem>>) attributes {dimension_semantics = [#tpu.dimension_semantics<parallel>], iteration_bounds = array<i64: 2>, scalar_prefetch = 0 : i64, scratch_operands = 0 : i64, tpu.core_type = #tpu.core_type<tc>, window_params = [{transform_indices = @transform_0, window_bounds = array<i64: 1, 8, 128>}, {transform_indices = @transform_1, window_bounds = array<i64: 1, 1, 8>}, {pipeline_mode = #tpu.pipeline_mode<synchronous>, transform_indices = @transform_2, window_bounds = array<i64: 128, 384>}, {pipeline_mode = #tpu.pipeline_mode<synchronous>, transform_indices = @transform_3, window_bounds = array<i64: 128, 128>}, {pipeline_mode = #tpu.pipeline_mode<synchronous>, transform_indices = @transform_4, window_bounds = array<i64: 128, 512>}, {pipeline_mode = #tpu.pipeline_mode<synchronous>, transform_indices = @transform_5, window_bounds = array<i64: 512, 128>}, {pipeline_mode = #tpu.pipeline_mode<synchronous>, transform_indices = @transform_6, window_bounds = array<i64: 16, 128>}, {pipeline_mode = #tpu.pipeline_mode<synchronous>, transform_indices = @transform_7, window_bounds = array<i64: 1, 512>}, {transform_indices = @transform_8, window_bounds = array<i64: 1, 1, 128>}]} {
    %c0 = arith.constant 0 : index
    %c0_0 = arith.constant 0 : index
    %c0_1 = arith.constant 0 : index
    %0 = vector.load %arg1[%c0, %c0_0, %c0_1] : memref<1x8x128xf32, #tpu.memory_space<vmem>>, vector<1x8x128xf32>
    %1 = vector.shape_cast %0 : vector<1x8x128xf32> to vector<8x128xf32>
    %2 = arith.truncf %1 : vector<8x128xf32> to vector<8x128xbf16>
    %c0_2 = arith.constant 0 : index
    %c0_3 = arith.constant 0 : index
    %3 = vector.load %arg3[%c0_2, %c0_3] : memref<128x384xbf16, #tpu.memory_space<vmem>>, vector<128x384xbf16>
    %cst = arith.constant dense<0.000000e+00> : vector<8x384xf32>
    %4 = tpu.matmul %2, %3, %cst {dimension_numbers = #tpu.dot_dimension_numbers<[1], [0], [0], [1], [0, 0, 1, 1], [], []>} : vector<8x128xbf16>, vector<128x384xbf16>, vector<8x384xf32> -> vector<8x384xf32>
    %5 = vector.extract_strided_slice %4 {offsets = [0, 0], sizes = [8, 128], strides = [1, 1]} : vector<8x384xf32> to vector<8x128xf32>
    %c0_4 = arith.constant 0 : index
    %c0_5 = arith.constant 0 : index
    %6 = vector.load %arg7[%c0_4, %c0_5] : memref<16x128xf32, #tpu.memory_space<vmem>>, vector<1x128xf32>
    %7 = vector.broadcast %6 : vector<1x128xf32> to vector<8x128xf32>
    %8 = arith.addf %5, %7 : vector<8x128xf32>
    %9 = vector.shape_cast %8 : vector<8x128xf32> to vector<1x8x128xf32>
    %10 = vector.extract_strided_slice %4 {offsets = [0, 128], sizes = [8, 128], strides = [1, 1]} : vector<8x384xf32> to vector<8x128xf32>
    %c1 = arith.constant 1 : index
    %c0_6 = arith.constant 0 : index
    %11 = vector.load %arg7[%c1, %c0_6] : memref<16x128xf32, #tpu.memory_space<vmem>>, vector<1x128xf32>
    %12 = vector.broadcast %11 : vector<1x128xf32> to vector<8x128xf32>
    %13 = arith.addf %10, %12 : vector<8x128xf32>
    %14 = vector.shape_cast %13 : vector<8x128xf32> to vector<1x8x128xf32>
    %15 = vector.extract_strided_slice %4 {offsets = [0, 256], sizes = [8, 128], strides = [1, 1]} : vector<8x384xf32> to vector<8x128xf32>
    %c2 = arith.constant 2 : index
    %c0_7 = arith.constant 0 : index
    %16 = vector.load %arg7[%c2, %c0_7] : memref<16x128xf32, #tpu.memory_space<vmem>>, vector<1x128xf32>
    %17 = vector.broadcast %16 : vector<1x128xf32> to vector<8x128xf32>
    %18 = arith.addf %15, %17 : vector<8x128xf32>
    %19 = vector.shape_cast %18 : vector<8x128xf32> to vector<1x8x128xf32>
    %20 = arith.truncf %9 : vector<1x8x128xf32> to vector<1x8x128xbf16>
    %21 = arith.truncf %14 : vector<1x8x128xf32> to vector<1x8x128xbf16>
    "tpu.trace_start"() <{level = 10 : i32, message = "bqd,bkd->bqk"}> : () -> ()
    %cst_8 = arith.constant dense<0.000000e+00> : vector<1x8x8xf32>
    %22 = tpu.matmul %20, %21, %cst_8 {dimension_numbers = #tpu.dot_dimension_numbers<[2], [2], [1], [1], [0, 0, 0, 1, 1, 1], [0], [0]>} : vector<1x8x128xbf16>, vector<1x8x128xbf16>, vector<1x8x8xf32> -> vector<1x8x8xf32>
    "tpu.trace_stop"() : () -> ()
    %cst_9 = arith.constant 0.0883883461 : f32
    %23 = vector.broadcast %cst_9 : f32 to vector<1x8x8xf32>
    %24 = arith.mulf %22, %23 : vector<1x8x8xf32>
    %c0_10 = arith.constant 0 : index
    %c0_11 = arith.constant 0 : index
    %c0_12 = arith.constant 0 : index
    %25 = vector.load %arg2[%c0_10, %c0_11, %c0_12] : memref<1x1x8xf32, #tpu.memory_space<vmem>>, vector<1x1x8xf32>
    %cst_13 = arith.constant 1.000000e+00 : f32
    %26 = vector.broadcast %cst_13 : f32 to vector<1x1x8xf32>
    %27 = arith.subf %26, %25 : vector<1x1x8xf32>
    %cst_14 = arith.constant -1.000000e+09 : f32
    %28 = vector.broadcast %cst_14 : f32 to vector<1x1x8xf32>
    %29 = arith.mulf %27, %28 : vector<1x1x8xf32>
    %30 = vector.broadcast %29 : vector<1x1x8xf32> to vector<1x8x8xf32>
    %31 = arith.addf %24, %30 : vector<1x8x8xf32>
    %cst_15 = arith.constant dense<0xFF800000> : vector<1x8xf32>
    %32 = vector.multi_reduction <maximumf>, %31, %cst_15 [2] : vector<1x8x8xf32> to vector<1x8xf32>
    %33 = vector.shape_cast %32 : vector<1x8xf32> to vector<1x8x1xf32>
    %34 = vector.broadcast %33 : vector<1x8x1xf32> to vector<1x8x8xf32>
    %35 = arith.subf %31, %34 : vector<1x8x8xf32>
    %36 = math.exp %35 : vector<1x8x8xf32>
    %cst_16 = arith.constant dense<0.000000e+00> : vector<1x8xf32>
    %37 = vector.multi_reduction <add>, %36, %cst_16 [2] : vector<1x8x8xf32> to vector<1x8xf32>
    %38 = vector.shape_cast %37 : vector<1x8xf32> to vector<1x8x1xf32>
    %39 = tpu.reciprocal %38 {approx = true} : vector<1x8x1xf32> -> vector<1x8x1xf32>
    %40 = vector.broadcast %39 : vector<1x8x1xf32> to vector<1x8x8xf32>
    %41 = arith.mulf %36, %40 : vector<1x8x8xf32>
    %42 = arith.truncf %41 : vector<1x8x8xf32> to vector<1x8x8xbf16>
    %43 = arith.truncf %19 : vector<1x8x128xf32> to vector<1x8x128xbf16>
    "tpu.trace_start"() <{level = 10 : i32, message = "bqk,bkd->bqd"}> : () -> ()
    %cst_17 = arith.constant dense<0.000000e+00> : vector<1x8x128xf32>
    %44 = tpu.matmul %42, %43, %cst_17 {dimension_numbers = #tpu.dot_dimension_numbers<[2], [1], [1], [2], [0, 0, 0, 1, 1, 2], [0], [0]>} : vector<1x8x8xbf16>, vector<1x8x128xbf16>, vector<1x8x128xf32> -> vector<1x8x128xf32>
    "tpu.trace_stop"() : () -> ()
    %45 = vector.shape_cast %44 : vector<1x8x128xf32> to vector<8x128xf32>
    %46 = arith.truncf %45 : vector<8x128xf32> to vector<8x128xbf16>
    %c0_18 = arith.constant 0 : index
    %c0_19 = arith.constant 0 : index
    %47 = vector.load %arg4[%c0_18, %c0_19] : memref<128x128xbf16, #tpu.memory_space<vmem>>, vector<128x128xbf16>
    %cst_20 = arith.constant dense<0.000000e+00> : vector<8x128xf32>
    %48 = tpu.matmul %46, %47, %cst_20 {dimension_numbers = #tpu.dot_dimension_numbers<[1], [0], [0], [1], [0, 0, 1, 1], [], []>} : vector<8x128xbf16>, vector<128x128xbf16>, vector<8x128xf32> -> vector<8x128xf32>
    %c3 = arith.constant 3 : index
    %c0_21 = arith.constant 0 : index
    %49 = vector.load %arg7[%c3, %c0_21] : memref<16x128xf32, #tpu.memory_space<vmem>>, vector<1x128xf32>
    %50 = vector.broadcast %49 : vector<1x128xf32> to vector<8x128xf32>
    %51 = arith.addf %48, %50 : vector<8x128xf32>
    %52 = arith.addf %1, %51 : vector<8x128xf32>
    %c4 = arith.constant 4 : index
    %c0_22 = arith.constant 0 : index
    %53 = vector.load %arg7[%c4, %c0_22] : memref<16x128xf32, #tpu.memory_space<vmem>>, vector<1x128xf32>
    %c5 = arith.constant 5 : index
    %c0_23 = arith.constant 0 : index
    %54 = vector.load %arg7[%c5, %c0_23] : memref<16x128xf32, #tpu.memory_space<vmem>>, vector<1x128xf32>
    %cst_24 = arith.constant dense<0.000000e+00> : vector<8xf32>
    %55 = vector.multi_reduction <add>, %52, %cst_24 [1] : vector<8x128xf32> to vector<8xf32>
    %56 = vector.shape_cast %55 : vector<8xf32> to vector<8x1xf32>
    %cst_25 = arith.constant 1.280000e+02 : f32
    %57 = vector.broadcast %cst_25 : f32 to vector<8x1xf32>
    %58 = arith.divf %56, %57 : vector<8x1xf32>
    %59 = vector.broadcast %58 : vector<8x1xf32> to vector<8x128xf32>
    %60 = arith.subf %52, %59 : vector<8x128xf32>
    %61 = arith.mulf %60, %60 : vector<8x128xf32>
    %cst_26 = arith.constant dense<0.000000e+00> : vector<8xf32>
    %62 = vector.multi_reduction <add>, %61, %cst_26 [1] : vector<8x128xf32> to vector<8xf32>
    %63 = vector.shape_cast %62 : vector<8xf32> to vector<8x1xf32>
    %cst_27 = arith.constant 1.280000e+02 : f32
    %64 = vector.broadcast %cst_27 : f32 to vector<8x1xf32>
    %65 = arith.divf %63, %64 : vector<8x1xf32>
    %66 = vector.broadcast %58 : vector<8x1xf32> to vector<8x128xf32>
    %67 = arith.subf %52, %66 : vector<8x128xf32>
    %cst_28 = arith.constant 9.99999996E-13 : f32
    %68 = vector.broadcast %cst_28 : f32 to vector<8x1xf32>
    %69 = arith.addf %65, %68 : vector<8x1xf32>
    %70 = math.rsqrt %69 : vector<8x1xf32>
    %71 = vector.broadcast %70 : vector<8x1xf32> to vector<8x128xf32>
    %72 = arith.mulf %67, %71 : vector<8x128xf32>
    %73 = vector.broadcast %53 : vector<1x128xf32> to vector<8x128xf32>
    %74 = arith.mulf %72, %73 : vector<8x128xf32>
    %75 = vector.broadcast %54 : vector<1x128xf32> to vector<8x128xf32>
    %76 = arith.addf %74, %75 : vector<8x128xf32>
    %77 = arith.truncf %76 : vector<8x128xf32> to vector<8x128xbf16>
    %c0_29 = arith.constant 0 : index
    %c0_30 = arith.constant 0 : index
    %78 = vector.load %arg5[%c0_29, %c0_30] : memref<128x512xbf16, #tpu.memory_space<vmem>>, vector<128x512xbf16>
    %cst_31 = arith.constant dense<0.000000e+00> : vector<8x512xf32>
    %79 = tpu.matmul %77, %78, %cst_31 {dimension_numbers = #tpu.dot_dimension_numbers<[1], [0], [0], [1], [0, 0, 1, 1], [], []>} : vector<8x128xbf16>, vector<128x512xbf16>, vector<8x512xf32> -> vector<8x512xf32>
    %c0_32 = arith.constant 0 : index
    %c0_33 = arith.constant 0 : index
    %80 = vector.load %arg8[%c0_32, %c0_33] : memref<1x512xf32, #tpu.memory_space<vmem>>, vector<1x512xf32>
    %81 = vector.broadcast %80 : vector<1x512xf32> to vector<8x512xf32>
    %82 = arith.addf %79, %81 : vector<8x512xf32>
    %83 = arith.mulf %82, %82 : vector<8x512xf32>
    %84 = arith.mulf %82, %83 : vector<8x512xf32>
    %cst_34 = arith.constant 4.471500e-02 : f32
    %85 = vector.broadcast %cst_34 : f32 to vector<8x512xf32>
    %86 = arith.mulf %85, %84 : vector<8x512xf32>
    %87 = arith.addf %82, %86 : vector<8x512xf32>
    %cst_35 = arith.constant 0.797884583 : f32
    %88 = vector.broadcast %cst_35 : f32 to vector<8x512xf32>
    %89 = arith.mulf %88, %87 : vector<8x512xf32>
    %90 = math.tanh %89 : vector<8x512xf32>
    %cst_36 = arith.constant 1.000000e+00 : f32
    %91 = vector.broadcast %cst_36 : f32 to vector<8x512xf32>
    %92 = arith.addf %91, %90 : vector<8x512xf32>
    %cst_37 = arith.constant 5.000000e-01 : f32
    %93 = vector.broadcast %cst_37 : f32 to vector<8x512xf32>
    %94 = arith.mulf %93, %92 : vector<8x512xf32>
    %95 = arith.mulf %82, %94 : vector<8x512xf32>
    %96 = arith.truncf %95 : vector<8x512xf32> to vector<8x512xbf16>
    %c0_38 = arith.constant 0 : index
    %c0_39 = arith.constant 0 : index
    %97 = vector.load %arg6[%c0_38, %c0_39] : memref<512x128xbf16, #tpu.memory_space<vmem>>, vector<512x128xbf16>
    %cst_40 = arith.constant dense<0.000000e+00> : vector<8x128xf32>
    %98 = tpu.matmul %96, %97, %cst_40 {dimension_numbers = #tpu.dot_dimension_numbers<[1], [0], [0], [1], [0, 0, 1, 1], [], []>} : vector<8x512xbf16>, vector<512x128xbf16>, vector<8x128xf32> -> vector<8x128xf32>
    %c6 = arith.constant 6 : index
    %c0_41 = arith.constant 0 : index
    %99 = vector.load %arg7[%c6, %c0_41] : memref<16x128xf32, #tpu.memory_space<vmem>>, vector<1x128xf32>
    %100 = vector.broadcast %99 : vector<1x128xf32> to vector<8x128xf32>
    %101 = arith.addf %98, %100 : vector<8x128xf32>
    %102 = arith.addf %76, %101 : vector<8x128xf32>
    %c7 = arith.constant 7 : index
    %c0_42 = arith.constant 0 : index
    %103 = vector.load %arg7[%c7, %c0_42] : memref<16x128xf32, #tpu.memory_space<vmem>>, vector<1x128xf32>
    %c8 = arith.constant 8 : index
    %c0_43 = arith.constant 0 : index
    %104 = vector.load %arg7[%c8, %c0_43] : memref<16x128xf32, #tpu.memory_space<vmem>>, vector<1x128xf32>
    %cst_44 = arith.constant dense<0.000000e+00> : vector<8xf32>
    %105 = vector.multi_reduction <add>, %102, %cst_44 [1] : vector<8x128xf32> to vector<8xf32>
    %106 = vector.shape_cast %105 : vector<8xf32> to vector<8x1xf32>
    %cst_45 = arith.constant 1.280000e+02 : f32
    %107 = vector.broadcast %cst_45 : f32 to vector<8x1xf32>
    %108 = arith.divf %106, %107 : vector<8x1xf32>
    %109 = vector.broadcast %108 : vector<8x1xf32> to vector<8x128xf32>
    %110 = arith.subf %102, %109 : vector<8x128xf32>
    %111 = arith.mulf %110, %110 : vector<8x128xf32>
    %cst_46 = arith.constant dense<0.000000e+00> : vector<8xf32>
    %112 = vector.multi_reduction <add>, %111, %cst_46 [1] : vector<8x128xf32> to vector<8xf32>
    %113 = vector.shape_cast %112 : vector<8xf32> to vector<8x1xf32>
    %cst_47 = arith.constant 1.280000e+02 : f32
    %114 = vector.broadcast %cst_47 : f32 to vector<8x1xf32>
    %115 = arith.divf %113, %114 : vector<8x1xf32>
    %116 = vector.broadcast %108 : vector<8x1xf32> to vector<8x128xf32>
    %117 = arith.subf %102, %116 : vector<8x128xf32>
    %cst_48 = arith.constant 9.99999996E-13 : f32
    %118 = vector.broadcast %cst_48 : f32 to vector<8x1xf32>
    %119 = arith.addf %115, %118 : vector<8x1xf32>
    %120 = math.rsqrt %119 : vector<8x1xf32>
    %121 = vector.broadcast %120 : vector<8x1xf32> to vector<8x128xf32>
    %122 = arith.mulf %117, %121 : vector<8x128xf32>
    %123 = vector.broadcast %103 : vector<1x128xf32> to vector<8x128xf32>
    %124 = arith.mulf %122, %123 : vector<8x128xf32>
    %125 = vector.broadcast %104 : vector<1x128xf32> to vector<8x128xf32>
    %126 = arith.addf %124, %125 : vector<8x128xf32>
    %127 = vector.shape_cast %126 : vector<8x128xf32> to vector<1x8x128xf32>
    %128 = vector.extract_strided_slice %127 {offsets = [0, 0, 0], sizes = [1, 1, 128], strides = [1, 1, 1]} : vector<1x8x128xf32> to vector<1x1x128xf32>
    %129 = vector.shape_cast %128 : vector<1x1x128xf32> to vector<1x128xf32>
    %c9 = arith.constant 9 : index
    %c0_49 = arith.constant 0 : index
    %130 = vector.load %arg7[%c9, %c0_49] : memref<16x128xf32, #tpu.memory_space<vmem>>, vector<1x128xf32>
    %131 = arith.mulf %129, %130 : vector<1x128xf32>
    %cst_50 = arith.constant dense<0.000000e+00> : vector<1xf32>
    %132 = vector.multi_reduction <add>, %131, %cst_50 [1] : vector<1x128xf32> to vector<1xf32>
    %133 = vector.shape_cast %132 : vector<1xf32> to vector<1x1xf32>
    %c10 = arith.constant 10 : index
    %c0_51 = arith.constant 0 : index
    %134 = vector.load %arg7[%c10, %c0_51] : memref<16x128xf32, #tpu.memory_space<vmem>>, vector<1x1xf32>
    %135 = arith.addf %133, %134 : vector<1x1xf32>
    %136 = vector.shape_cast %135 : vector<1x1xf32> to vector<1x1x1xf32>
    %137 = vector.shape_cast %136 : vector<1x1x1xf32> to vector<1x1x1xf32>
    %138 = vector.broadcast %137 : vector<1x1x1xf32> to vector<1x1x128xf32>
    %c0_52 = arith.constant 0 : index
    %c0_53 = arith.constant 0 : index
    %c0_54 = arith.constant 0 : index
    %139 = vector.load %arg9[%c0_52, %c0_53, %c0_54] : memref<1x1x128xf32, #tpu.memory_space<vmem>>, vector<1x1x128xf32>
    tpu.vector_store %arg9[%c0_52, %c0_53, %c0_54], %138 {strides = array<i32>} : memref<1x1x128xf32, #tpu.memory_space<vmem>>, vector<1x1x128xf32>,
    return
  }
  func.func @transform_0(%arg0: i32) -> (i32, i32, i32) {
    %c0_i32 = arith.constant 0 : i32
    %c0_i32_0 = arith.constant 0 : i32
    %c0_i32_1 = arith.constant 0 : i32
    return %arg0, %c0_i32, %c0_i32_0 : i32, i32, i32
  }
  func.func @transform_1(%arg0: i32) -> (i32, i32, i32) {
    %c0_i32 = arith.constant 0 : i32
    %c0_i32_0 = arith.constant 0 : i32
    %c0_i32_1 = arith.constant 0 : i32
    return %arg0, %c0_i32, %c0_i32_0 : i32, i32, i32
  }
  func.func @transform_2(%arg0: i32) -> (i32, i32) {
    %c0_i32 = arith.constant 0 : i32
    %c0_i32_0 = arith.constant 0 : i32
    %c0_i32_1 = arith.constant 0 : i32
    return %c0_i32, %c0_i32_0 : i32, i32
  }
  func.func @transform_3(%arg0: i32) -> (i32, i32) {
    %c0_i32 = arith.constant 0 : i32
    %c0_i32_0 = arith.constant 0 : i32
    %c0_i32_1 = arith.constant 0 : i32
    return %c0_i32, %c0_i32_0 : i32, i32
  }
  func.func @transform_4(%arg0: i32) -> (i32, i32) {
    %c0_i32 = arith.constant 0 : i32
    %c0_i32_0 = arith.constant 0 : i32
    %c0_i32_1 = arith.constant 0 : i32
    return %c0_i32, %c0_i32_0 : i32, i32
  }
  func.func @transform_5(%arg0: i32) -> (i32, i32) {
    %c0_i32 = arith.constant 0 : i32
    %c0_i32_0 = arith.constant 0 : i32
    %c0_i32_1 = arith.constant 0 : i32
    return %c0_i32, %c0_i32_0 : i32, i32
  }
  func.func @transform_6(%arg0: i32) -> (i32, i32) {
    %c0_i32 = arith.constant 0 : i32
    %c0_i32_0 = arith.constant 0 : i32
    %c0_i32_1 = arith.constant 0 : i32
    return %c0_i32, %c0_i32_0 : i32, i32
  }
  func.func @transform_7(%arg0: i32) -> (i32, i32) {
    %c0_i32 = arith.constant 0 : i32
    %c0_i32_0 = arith.constant 0 : i32
    %c0_i32_1 = arith.constant 0 : i32
    return %c0_i32, %c0_i32_0 : i32, i32
  }
  func.func @transform_8(%arg0: i32) -> (i32, i32, i32) {
    %c0_i32 = arith.constant 0 : i32
    %c0_i32_0 = arith.constant 0 : i32
    %c0_i32_1 = arith.constant 0 : i32
    return %arg0, %c0_i32, %c0_i32_0 : i32, i32, i32
  }
}

</mosaic_0001>

<llo_original>
// kernel: finbert_regressor_forward.1
$region0: #{finbert_regressor_forward.1}
  #allocation0 [shape = 'u32[]', space=smem, size = 0x4, offset = 0x4, fixed_abs, tag = 'smem constant byte address 0x4 - core index']
  #allocation1 [shape = 'u32[144,128]{1,0:T(1,128)}', space=vmem, size = 0x12000, scoped, tag = 'internal scratch']
  %s0 = inlined_call_operand.vmem [shape: f32[2,8,128], index: 0, kind: input, shape index: {}]
  %s1 = inlined_call_operand.vmem [shape: f32[2,1,8], index: 1, kind: input, shape index: {}]
  %s2 = inlined_call_operand.vmem [shape: bf16[128,384], index: 2, kind: input, shape index: {}]
  %s3 = inlined_call_operand.hbm [shape: bf16[128,128], index: 3, kind: input, shape index: {}]
  %s4 = inlined_call_operand.hbm [shape: bf16[128,512], index: 4, kind: input, shape index: {}]
  %s5 = inlined_call_operand.hbm [shape: bf16[512,128], index: 5, kind: input, shape index: {}]
  %s6 = inlined_call_operand.vmem [shape: f32[16,128], index: 6, kind: input, shape index: {}]
  %s7 = inlined_call_operand.vmem [shape: f32[1,512], index: 7, kind: input, shape index: {}]
  %s8 = inlined_call_operand.vmem [shape: f32[2,1,128], index: 8, kind: output, shape index: {}]
  %s9 = sld [smem:[#allocation0]]
  $region77: #{finbert_regressor_forward.1} parent=0
    _
  %s11 = ssub.s32 1, %s9
  %s12 = scalar_select 0, %s11, %s9
  $region1: #{finbert_regressor_forward.1} parent=0
    #allocation2 [shape = 'u8[32768]{0}', space=vmem, size = 0x8000, scoped, tag = 'input window, operand 3, single buffered']
    #allocation3 [shape = 's32[2]{0}', space=sflag, size = 0x8, scoped, tag = 'scoped memory for finbert_regressor_forward.1']
    #allocation4 [shape = 'u8[131072]{0}', space=vmem, size = 0x20000, scoped, tag = 'input window, operand 4, single buffered']
    #allocation5 [shape = 's32[1]{0}', space=sflag, size = 0x4, scoped, tag = 'scoped memory for finbert_regressor_forward.1']
    #allocation6 [shape = 'u8[131072]{0}', space=vmem, size = 0x20000, scoped, tag = 'input window, operand 5, single buffered']
    %13 = vsyncpa [#allocation3], 0
    %14 = vsyncpa [#allocation5], 0
    loop: start=0, step=1, limit=4
    $region2: #{finbert_regressor_forward.1} parent=1 // loop_pre_header
      _
    $region3: #{finbert_regressor_forward.1} parent=1 // loop_header
      %s16 = sphi 0, %s20
      %p17 = scmp.ge.s32.totalorder %s16, 4
      %s26 = sphi 0, %s28
      %s29 = sphi 0, %s26
      %s30 = sphi 0, %s29
      %s46 = sphi 0, %s30
      %s52 = sphi 0, %s54
      %s55 = sphi 0, %s52
      %s56 = sphi 0, %s55
      %s72 = sphi 0, %s56
      %s76 = sphi 0, %s76
      %s78 = sphi 0, %s76
      %s79 = sphi 0, %s78
      %s93 = sphi 0, %s79
      %s97 = sphi 0, %s97
      %s99 = sphi 0, %s97
      %s100 = sphi 0, %s99
      %s114 = sphi 0, %s100
      %s118 = sphi 0, %s118
      %s120 = sphi 0, %s118
      %s121 = sphi 0, %s120
      %s135 = sphi 0, %s121
      %s139 = sphi 0, %s139
      %s141 = sphi 0, %s139
      %s142 = sphi 0, %s141
      %s156 = sphi 0, %s142
      %s160 = sphi 0, %s160
      %s162 = sphi 0, %s160
      %s163 = sphi 0, %s162
      %s177 = sphi 0, %s163
      %s181 = sphi 0, %s181
      %s183 = sphi 0, %s181
      %s184 = sphi 0, %s183
      %s198 = sphi 0, %s184
      %s204 = sphi 0, %s206
      %s207 = sphi 0, %s204
      %s208 = sphi 0, %s207
      %s224 = sphi 0, %s208
    $region4: #{finbert_regressor_forward.1} parent=1 // loop_header_branch
      %19 = sbr.rel (%p17) target = $region8
    $region5: #{finbert_regressor_forward.1} parent=1 // loop_body
      %s21 = ssub.s32 %s16, 1
      %s22 = ssub.s32 %s16, 2
      %s23 = sadd.s32 %s16, 1
      %s24 = ssub.s32 %s16, %s23
      %p25 = scmp.eq.s32.totalorder %s24, 0
      %s27 = sadd.s32 %s26, 1
      %s28 = scalar_select %p25, %s26, %s27
      %p31 = pneg %p25
      %p32 = scmp.eq.s32.totalorder %s16, 1
      %p33 = por %p31, %p32
      %p34 = scmp.ne.s32.totalorder %s26, %s29
      %p35 = scmp.eq.s32.totalorder %s16, 0
      %p36 = por %p34, %p35
      %p37 = scmp.ne.s32.totalorder %s26, %s29
      %p38 = scmp.eq.s32.totalorder %s21, 1
      %p39 = por %p37, %p38
      %p40 = scmp.ne.s32.totalorder %s29, %s30
      %p41 = scmp.eq.s32.totalorder %s21, 0
      %p42 = por %p40, %p41
      %p43 = scmp.ne.s32.totalorder %s29, %s30
      %p44 = scmp.eq.s32.totalorder %s22, 1
      %p45 = por %p43, %p44
      %p47 = scmp.ne.s32.totalorder %s30, %s46
      %p48 = scmp.eq.s32.totalorder %s22, 0
      %p49 = por %p47, %p48
      %s50 = ssub.s32 %s16, %s23
      %p51 = scmp.eq.s32.totalorder %s50, 0
      %s53 = sadd.s32 %s52, 1
      %s54 = scalar_select %p51, %s52, %s53
      %p57 = pneg %p51
      %p58 = scmp.eq.s32.totalorder %s16, 1
      %p59 = por %p57, %p58
      %p60 = scmp.ne.s32.totalorder %s52, %s55
      %p61 = scmp.eq.s32.totalorder %s16, 0
      %p62 = por %p60, %p61
      %p63 = scmp.ne.s32.totalorder %s52, %s55
      %p64 = scmp.eq.s32.totalorder %s21, 1
      %p65 = por %p63, %p64
      %p66 = scmp.ne.s32.totalorder %s55, %s56
      %p67 = scmp.eq.s32.totalorder %s21, 0
      %p68 = por %p66, %p67
      %p69 = scmp.ne.s32.totalorder %s55, %s56
      %p70 = scmp.eq.s32.totalorder %s22, 1
      %p71 = por %p69, %p70
      %p73 = scmp.ne.s32.totalorder %s56, %s72
      %p74 = scmp.eq.s32.totalorder %s22, 0
      %p75 = por %p73, %p74
      %s77 = sadd.s32 %s76, 1
      %p80 = scmp.eq.s32.totalorder %s16, 1
      %p81 = scmp.ne.s32.totalorder %s76, %s78
      %p82 = scmp.eq.s32.totalorder %s16, 0
      %p83 = por %p81, %p82
      %p84 = scmp.ne.s32.totalorder %s76, %s78
      %p85 = scmp.eq.s32.totalorder %s21, 1
      %p86 = por %p84, %p85
      %p87 = scmp.ne.s32.totalorder %s78, %s79
      %p88 = scmp.eq.s32.totalorder %s21, 0
      %p89 = por %p87, %p88
      %p90 = scmp.ne.s32.totalorder %s78, %s79
      %p91 = scmp.eq.s32.totalorder %s22, 1
      %p92 = por %p90, %p91
      %p94 = scmp.ne.s32.totalorder %s79, %s93
      %p95 = scmp.eq.s32.totalorder %s22, 0
      %p96 = por %p94, %p95
      %s98 = sadd.s32 %s97, 1
      %p101 = scmp.eq.s32.totalorder %s16, 1
      %p102 = scmp.ne.s32.totalorder %s97, %s99
      %p103 = scmp.eq.s32.totalorder %s16, 0
      %p104 = por %p102, %p103
      %p105 = scmp.ne.s32.totalorder %s97, %s99
      %p106 = scmp.eq.s32.totalorder %s21, 1
      %p107 = por %p105, %p106
      %p108 = scmp.ne.s32.totalorder %s99, %s100
      %p109 = scmp.eq.s32.totalorder %s21, 0
      %p110 = por %p108, %p109
      %p111 = scmp.ne.s32.totalorder %s99, %s100
      %p112 = scmp.eq.s32.totalorder %s22, 1
      %p113 = por %p111, %p112
      %p115 = scmp.ne.s32.totalorder %s100, %s114
      %p116 = scmp.eq.s32.totalorder %s22, 0
      %p117 = por %p115, %p116
      %s119 = sadd.s32 %s118, 1
      %p122 = scmp.eq.s32.totalorder %s16, 1
      %p123 = scmp.ne.s32.totalorder %s118, %s120
      %p124 = scmp.eq.s32.totalorder %s16, 0
      %p125 = por %p123, %p124
      %p126 = scmp.ne.s32.totalorder %s118, %s120
      %p127 = scmp.eq.s32.totalorder %s21, 1
      %p128 = por %p126, %p127
      %p129 = scmp.ne.s32.totalorder %s120, %s121
      %p130 = scmp.eq.s32.totalorder %s21, 0
      %p131 = por %p129, %p130
      %p132 = scmp.ne.s32.totalorder %s120, %s121
      %p133 = scmp.eq.s32.totalorder %s22, 1
      %p134 = por %p132, %p133
      %p136 = scmp.ne.s32.totalorder %s121, %s135
      %p137 = scmp.eq.s32.totalorder %s22, 0
      %p138 = por %p136, %p137
      %s140 = sadd.s32 %s139, 1
      %p143 = scmp.eq.s32.totalorder %s16, 1
      %p144 = scmp.ne.s32.totalorder %s139, %s141
      %p145 = scmp.eq.s32.totalorder %s16, 0
      %p146 = por %p144, %p145
      %p147 = scmp.ne.s32.totalorder %s139, %s141
      %p148 = scmp.eq.s32.totalorder %s21, 1
      %p149 = por %p147, %p148
      %p150 = scmp.ne.s32.totalorder %s141, %s142
      %p151 = scmp.eq.s32.totalorder %s21, 0
      %p152 = por %p150, %p151
      %p153 = scmp.ne.s32.totalorder %s141, %s142
      %p154 = scmp.eq.s32.totalorder %s22, 1
      %p155 = por %p153, %p154
      %p157 = scmp.ne.s32.totalorder %s142, %s156
      %p158 = scmp.eq.s32.totalorder %s22, 0
      %p159 = por %p157, %p158
      %s161 = sadd.s32 %s160, 1
      %p164 = scmp.eq.s32.totalorder %s16, 1
      %p165 = scmp.ne.s32.totalorder %s160, %s162
      %p166 = scmp.eq.s32.totalorder %s16, 0
      %p167 = por %p165, %p166
      %p168 = scmp.ne.s32.totalorder %s160, %s162
      %p169 = scmp.eq.s32.totalorder %s21, 1
      %p170 = por %p168, %p169
      %p171 = scmp.ne.s32.totalorder %s162, %s163
      %p172 = scmp.eq.s32.totalorder %s21, 0
      %p173 = por %p171, %p172
      %p174 = scmp.ne.s32.totalorder %s162, %s163
      %p175 = scmp.eq.s32.totalorder %s22, 1
      %p176 = por %p174, %p175
      %p178 = scmp.ne.s32.totalorder %s163, %s177
      %p179 = scmp.eq.s32.totalorder %s22, 0
      %p180 = por %p178, %p179
      %s182 = sadd.s32 %s181, 1
      %p185 = scmp.eq.s32.totalorder %s16, 1
      %p186 = scmp.ne.s32.totalorder %s181, %s183
      %p187 = scmp.eq.s32.totalorder %s16, 0
      %p188 = por %p186, %p187
      %p189 = scmp.ne.s32.totalorder %s181, %s183
      %p190 = scmp.eq.s32.totalorder %s21, 1
      %p191 = por %p189, %p190
      %p192 = scmp.ne.s32.totalorder %s183, %s184
      %p193 = scmp.eq.s32.totalorder %s21, 0
      %p194 = por %p192, %p193
      %p195 = scmp.ne.s32.totalorder %s183, %s184
      %p196 = scmp.eq.s32.totalorder %s22, 1
      %p197 = por %p195, %p196
      %p199 = scmp.ne.s32.totalorder %s184, %s198
      %p200 = scmp.eq.s32.totalorder %s22, 0
      %p201 = por %p199, %p200
      %s202 = ssub.s32 %s16, %s23
      %p203 = scmp.eq.s32.totalorder %s202, 0
      %s205 = sadd.s32 %s204, 1
      %s206 = scalar_select %p203, %s204, %s205
      %p209 = pneg %p203
      %p210 = scmp.eq.s32.totalorder %s16, 1
      %p211 = por %p209, %p210
      %p212 = scmp.ne.s32.totalorder %s204, %s207
      %p213 = scmp.eq.s32.totalorder %s16, 0
      %p214 = por %p212, %p213
      %p215 = scmp.ne.s32.totalorder %s204, %s207
      %p216 = scmp.eq.s32.totalorder %s21, 1
      %p217 = por %p215, %p216
      %p218 = scmp.ne.s32.totalorder %s207, %s208
      %p219 = scmp.eq.s32.totalorder %s21, 0
      %p220 = por %p218, %p219
      %p221 = scmp.ne.s32.totalorder %s207, %s208
      %p222 = scmp.eq.s32.totalorder %s22, 1
      %p223 = por %p221, %p222
      %p225 = scmp.ne.s32.totalorder %s208, %s224
      %p226 = scmp.eq.s32.totalorder %s22, 0
      %p227 = por %p225, %p226
      %p228 = scmp.le.s32.totalorder 1, %s16
      %p229 = scmp.lt.s32.totalorder %s16, 3
      %p230 = pnand %p228, %p229
      %p231 = pneg %p230
      // Predicated region
      $region9: #{finbert_regressor_forward.1} parent=5 // pred_check
        _
      $region10: #{finbert_regressor_forward.1} parent=5 // pred_check_branch
        %233 = sbr.rel (%p230) target = $region12
      $region11: #{finbert_regressor_forward.1} parent=5 // pred_region
        %s234 = ssub.s32 %s16, 1
        // Predicated region
        $region13: #{finbert_regressor_forward.1} parent=11 // pred_check
          %p235 = pneg %p89
        $region14: #{finbert_regressor_forward.1} parent=11 // pred_check_branch
          %237 = sbr.rel (%p235) target = $region16
        $region15: #{finbert_regressor_forward.1} parent=11 // pred_region
          _
        $region16: #{finbert_regressor_forward.1} parent=11 // pred_fallthru
          _
        // Predicated region
        $region17: #{finbert_regressor_forward.1} parent=11 // pred_check
          %p238 = pneg %p110
        $region18: #{finbert_regressor_forward.1} parent=11 // pred_check_branch
          %240 = sbr.rel (%p238) target = $region20
        $region19: #{finbert_regressor_forward.1} parent=11 // pred_region
          %s242 = ssub.s32 1024, 1024
          %243 = vsyncadd [#allocation3], %s242
          %s244 = sshll.u32 [#allocation2], 4
          %s245 = int_to_ptr.vmem [resolvable:$true] %s244
          %250 = dma.hbm_to_vmem [thread:$0]  %s3, 1024, %s245, [#allocation3], 64, 64, 4
        $region20: #{finbert_regressor_forward.1} parent=11 // pred_fallthru
          _
        // Predicated region
        $region21: #{finbert_regressor_forward.1} parent=11 // pred_check
          %p251 = pneg %p131
        $region22: #{finbert_regressor_forward.1} parent=11 // pred_check_branch
          %253 = sbr.rel (%p251) target = $region24
        $region23: #{finbert_regressor_forward.1} parent=11 // pred_region
          %s255 = ssub.s32 4096, 4096
          %256 = vsyncadd [#allocation5], %s255
          %s257 = sshll.u32 [#allocation4], 4
          %s258 = int_to_ptr.vmem [resolvable:$true] %s257
          %263 = dma.hbm_to_vmem [thread:$0]  %s4, 4096, %s258, [#allocation5], 256, 256, 16
        $region24: #{finbert_regressor_forward.1} parent=11 // pred_fallthru
          _
        // Predicated region
        $region25: #{finbert_regressor_forward.1} parent=11 // pred_check
          %p264 = pneg %p152
        $region26: #{finbert_regressor_forward.1} parent=11 // pred_check_branch
          %266 = sbr.rel (%p264) target = $region28
        $region27: #{finbert_regressor_forward.1} parent=11 // pred_region
          %s268 = ssub.s32 4096, 4096
          %269 = vsyncadd [#allocation5], %s268
          %s270 = sshll.u32 [#allocation6], 4
          %s271 = int_to_ptr.vmem [resolvable:$true] %s270
          %276 = dma.hbm_to_vmem [thread:$0]  %s5, 4096, %s271, [#allocation5], 64, 64, 4
        $region28: #{finbert_regressor_forward.1} parent=11 // pred_fallthru
          _
        // Predicated region
        $region29: #{finbert_regressor_forward.1} parent=11 // pred_check
          %p277 = pneg %p173
        $region30: #{finbert_regressor_forward.1} parent=11 // pred_check_branch
          %279 = sbr.rel (%p277) target = $region32
        $region31: #{finbert_regressor_forward.1} parent=11 // pred_region
          _
        $region32: #{finbert_regressor_forward.1} parent=11 // pred_fallthru
          _
        // Predicated region
        $region33: #{finbert_regressor_forward.1} parent=11 // pred_check
          %p280 = pneg %p194
        $region34: #{finbert_regressor_forward.1} parent=11 // pred_check_branch
          %282 = sbr.rel (%p280) target = $region36
        $region35: #{finbert_regressor_forward.1} parent=11 // pred_region
          _
        $region36: #{finbert_regressor_forward.1} parent=11 // pred_fallthru
          _
      $region12: #{finbert_regressor_forward.1} parent=5 // pred_fallthru
        _
      %p283 = scmp.lt.s32.totalorder %s16, 2
      // Predicated region
      $region37: #{finbert_regressor_forward.1} parent=5 // pred_check
        %p284 = pneg %p283
      $region38: #{finbert_regressor_forward.1} parent=5 // pred_check_branch
        %286 = sbr.rel (%p284) target = $region40
      $region39: #{finbert_regressor_forward.1} parent=5 // pred_region
        // Predicated region
        $region41: #{finbert_regressor_forward.1} parent=39 // pred_check
          %p287 = pneg %p36
        $region42: #{finbert_regressor_forward.1} parent=39 // pred_check_branch
          %289 = sbr.rel (%p287) target = $region44
        $region43: #{finbert_regressor_forward.1} parent=39 // pred_region
          %p290 = scmp.lt.s32.totalorder %s16, 1
          %s291 = scalar_select %p290, %s16, 1
          %s292 = smul.addr %s291, 8
          %s293 = scalar_lea.vmem %s0, %s292
        $region44: #{finbert_regressor_forward.1} parent=39 // pred_fallthru
          _
        // Predicated region
        $region45: #{finbert_regressor_forward.1} parent=39 // pred_check
          %p294 = pneg %p62
        $region46: #{finbert_regressor_forward.1} parent=39 // pred_check_branch
          %296 = sbr.rel (%p294) target = $region48
        $region47: #{finbert_regressor_forward.1} parent=39 // pred_region
          %p297 = scmp.lt.s32.totalorder %s16, 1
          %s298 = scalar_select %p297, %s16, 1
          %s299 = scalar_lea.vmem %s1, %s298
        $region48: #{finbert_regressor_forward.1} parent=39 // pred_fallthru
          _
      $region40: #{finbert_regressor_forward.1} parent=5 // pred_fallthru
        _
      %p300 = scmp.le.s32.totalorder 1, %s16
      %p301 = scmp.lt.s32.totalorder %s16, 3
      %p302 = pnand %p300, %p301
      %p303 = pneg %p302
      // Predicated region
      $region49: #{finbert_regressor_forward.1} parent=5 // pred_check
        _
      $region50: #{finbert_regressor_forward.1} parent=5 // pred_check_branch
        %305 = sbr.rel (%p302) target = $region52
      $region51: #{finbert_regressor_forward.1} parent=5 // pred_region
        %s306 = ssub.s32 %s16, 1
        // Predicated region
        $region53: #{finbert_regressor_forward.1} parent=51 // pred_check
          %p307 = pneg %p110
        $region54: #{finbert_regressor_forward.1} parent=51 // pred_check_branch
          %309 = sbr.rel (%p307) target = $region56
        $region55: #{finbert_regressor_forward.1} parent=51 // pred_region
          %310 = dma.done [#allocation3], 1024
        $region56: #{finbert_regressor_forward.1} parent=51 // pred_fallthru
          _
        // Predicated region
        $region57: #{finbert_regressor_forward.1} parent=51 // pred_check
          %p311 = pneg %p131
        $region58: #{finbert_regressor_forward.1} parent=51 // pred_check_branch
          %313 = sbr.rel (%p311) target = $region60
        $region59: #{finbert_regressor_forward.1} parent=51 // pred_region
          %314 = dma.done [#allocation5], 4096
        $region60: #{finbert_regressor_forward.1} parent=51 // pred_fallthru
          _
        // Predicated region
        $region61: #{finbert_regressor_forward.1} parent=51 // pred_check
          %p315 = pneg %p152
        $region62: #{finbert_regressor_forward.1} parent=51 // pred_check_branch
          %317 = sbr.rel (%p315) target = $region64
        $region63: #{finbert_regressor_forward.1} parent=51 // pred_region
          %318 = dma.done [#allocation5], 4096
        $region64: #{finbert_regressor_forward.1} parent=51 // pred_fallthru
          _
        %p319 = scmp.lt.s32.totalorder %s21, 1
        %s320 = scalar_select %p319, %s21, 1
        %s321 = smul.addr %s320, 8
        %s322 = scalar_lea.vmem %s0, %s321
        %p323 = pneg %p42
        %p324 = pneg %p39
        %p325 = scmp.lt.s32.totalorder %s21, 1
        %s326 = scalar_select %p325, %s21, 1
        %s327 = scalar_lea.vmem %s1, %s326
        %p328 = pneg %p68
        %p329 = pneg %p65
        %p330 = pneg %p89
        %p331 = pneg %p86
        %p332 = pneg %p110
        %p333 = pneg %p107
        %p334 = pneg %p131
        %p335 = pneg %p128
        %p336 = pneg %p152
        %p337 = pneg %p149
        %p338 = pneg %p173
        %p339 = pneg %p170
        %p340 = pneg %p194
        %p341 = pneg %p191
        %p342 = pneg %p220
        %p343 = pneg %p217
        %p344 = scmp.lt.s32.totalorder %s21, 1
        %s345 = scalar_select %p344, %s21, 1
        %s346 = scalar_lea.vmem %s8, %s345
        %p347 = scmp.lt.s32.totalorder %s21, 1
        %s348 = scalar_select %p347, %s21, 1
        %s349 = smul.addr %s348, 8
        %s350 = scalar_lea.vmem %s0, %s349
        %p351 = scmp.lt.s32.totalorder %s21, 1
        %s352 = scalar_select %p351, %s21, 1
        %s353 = scalar_lea.vmem %s1, %s352
        %p354 = scmp.lt.s32.totalorder %s21, 1
        %s355 = scalar_select %p354, %s21, 1
        %s356 = scalar_lea.vmem %s8, %s355
        %v358 = vld [vmem:[%s350] sm:$0xff]
        %v359 = vpack.c.bf16 %v358, %v358
        %v360 = vld [vmem:[%s2] sm:$0xff]
        %v361 = vld [vmem:[%s2 + $0x8] sm:$0xf]
        %v362 = vld [vmem:[%s2 + $0xc] sm:$0xff]
        %v363 = vld [vmem:[%s2 + $0x14] sm:$0xf]
        %v364 = vld [vmem:[%s2 + $0x18] sm:$0xff]
        %v365 = vld [vmem:[%s2 + $0x20] sm:$0xf]
        %v366 = vld [vmem:[%s2 + $0x24] sm:$0xff]
        %v367 = vld [vmem:[%s2 + $0x2c] sm:$0xf]
        %v368 = vld [vmem:[%s2 + $0x30] sm:$0xff]
        %v369 = vld [vmem:[%s2 + $0x38] sm:$0xf]
        %v370 = vld [vmem:[%s2 + $0x3c] sm:$0xff]
        %v371 = vld [vmem:[%s2 + $0x44] sm:$0xf]
        %v372 = vld [vmem:[%s2 + $0x48] sm:$0xff]
        %v373 = vld [vmem:[%s2 + $0x50] sm:$0xf]
        %v374 = vld [vmem:[%s2 + $0x54] sm:$0xff]
        %v375 = vld [vmem:[%s2 + $0x5c] sm:$0xf]
        %v376 = vld [vmem:[%s2 + $0x60] sm:$0xff]
        %v377 = vld [vmem:[%s2 + $0x68] sm:$0xf]
        %v378 = vld [vmem:[%s2 + $0x6c] sm:$0xff]
        %v379 = vld [vmem:[%s2 + $0x74] sm:$0xf]
        %v380 = vld [vmem:[%s2 + $0x78] sm:$0xff]
        %v381 = vld [vmem:[%s2 + $0x80] sm:$0xf]
        %v382 = vld [vmem:[%s2 + $0x84] sm:$0xff]
        %v383 = vld [vmem:[%s2 + $0x8c] sm:$0xf]
        %v384 = vld [vmem:[%s2 + $0x90] sm:$0xff]
        %v385 = vld [vmem:[%s2 + $0x98] sm:$0xf]
        %v386 = vld [vmem:[%s2 + $0x9c] sm:$0xff]
        %v387 = vld [vmem:[%s2 + $0xa4] sm:$0xf]
        %v388 = vld [vmem:[%s2 + $0xa8] sm:$0xff]
        %v389 = vld [vmem:[%s2 + $0xb0] sm:$0xf]
        %v390 = vld [vmem:[%s2 + $0xb4] sm:$0xff]
        %v391 = vld [vmem:[%s2 + $0xbc] sm:$0xf]
        %v424 = vunpack.c.l.b16 %v360
        %v425 = vunpack.c.h.b16 %v360
        %v426 = vunpack.c.l.b16 %v361
        %v427 = vunpack.c.l.b16 %v362
        %v428 = vunpack.c.h.b16 %v362
        %v429 = vunpack.c.l.b16 %v363
        %v430 = vunpack.c.l.b16 %v364
        %v431 = vunpack.c.h.b16 %v364
        %v432 = vunpack.c.l.b16 %v365
        %v433 = vunpack.c.l.b16 %v366
        %v434 = vunpack.c.h.b16 %v366
        %v435 = vunpack.c.l.b16 %v367
        %v436 = vunpack.c.l.b16 %v368
        %v437 = vunpack.c.h.b16 %v368
        %v438 = vunpack.c.l.b16 %v369
        %v439 = vunpack.c.l.b16 %v370
        %v440 = vunpack.c.h.b16 %v370
        %v441 = vunpack.c.l.b16 %v371
        %v442 = vunpack.c.l.b16 %v372
        %v443 = vunpack.c.h.b16 %v372
        %v444 = vunpack.c.l.b16 %v373
        %v445 = vunpack.c.l.b16 %v374
        %v446 = vunpack.c.h.b16 %v374
        %v447 = vunpack.c.l.b16 %v375
        %v448 = vunpack.c.l.b16 %v376
        %v449 = vunpack.c.h.b16 %v376
        %v450 = vunpack.c.l.b16 %v377
        %v451 = vunpack.c.l.b16 %v378
        %v452 = vunpack.c.h.b16 %v378
        %v453 = vunpack.c.l.b16 %v379
        %v454 = vunpack.c.l.b16 %v380
        %v455 = vunpack.c.h.b16 %v380
        %v456 = vunpack.c.l.b16 %v381
        %v457 = vunpack.c.l.b16 %v382
        %v458 = vunpack.c.h.b16 %v382
        %v459 = vunpack.c.l.b16 %v383
        %v460 = vunpack.c.l.b16 %v384
        %v461 = vunpack.c.h.b16 %v384
        %v462 = vunpack.c.l.b16 %v385
        %v463 = vunpack.c.l.b16 %v386
        %v464 = vunpack.c.h.b16 %v386
        %v465 = vunpack.c.l.b16 %v387
        %v466 = vunpack.c.l.b16 %v388
        %v467 = vunpack.c.h.b16 %v388
        %v468 = vunpack.c.l.b16 %v389
        %v469 = vunpack.c.l.b16 %v390
        %v470 = vunpack.c.h.b16 %v390
        %v471 = vunpack.c.l.b16 %v391
        %v472 = vpack.c.b16 %v427, %v424
        %v473 = vpack.c.b16 %v428, %v425
        %v474 = vpack.c.b16 %v429, %v426
        %v475 = vpack.c.b16 %v433, %v430
        %v476 = vpack.c.b16 %v434, %v431
        %v477 = vpack.c.b16 %v435, %v432
        %v478 = vpack.c.b16 %v439, %v436
        %v479 = vpack.c.b16 %v440, %v437
        %v480 = vpack.c.b16 %v441, %v438
        %v481 = vpack.c.b16 %v445, %v442
        %v482 = vpack.c.b16 %v446, %v443
        %v483 = vpack.c.b16 %v447, %v444
        %v484 = vpack.c.b16 %v451, %v448
        %v485 = vpack.c.b16 %v452, %v449
        %v486 = vpack.c.b16 %v453, %v450
        %v487 = vpack.c.b16 %v457, %v454
        %v488 = vpack.c.b16 %v458, %v455
        %v489 = vpack.c.b16 %v459, %v456
        %v490 = vpack.c.b16 %v463, %v460
        %v491 = vpack.c.b16 %v464, %v461
        %v492 = vpack.c.b16 %v465, %v462
        %v493 = vpack.c.b16 %v469, %v466
        %v494 = vpack.c.b16 %v470, %v467
        %v495 = vpack.c.b16 %v471, %v468
        %520 = vmatprep.subr.bf16.mxu0 %v473
        %521 = vmatpush1.bf16.msra.mxu0 %v472
        %522 = vmatprep.subr.bf16.mxu0 %v476
        %523 = vmatpush1.bf16.msra.mxu0 %v475
        %524 = vmatprep.subr.bf16.mxu0 %v479
        %525 = vmatpush1.bf16.msra.mxu0 %v478
        %526 = vmatprep.subr.bf16.mxu0 %v482
        %527 = vmatpush1.bf16.msra.mxu0 %v481
        %528 = vmatprep.subr.bf16.mxu0 %v485
        %529 = vmatpush1.bf16.msra.mxu0 %v484
        %530 = vmatprep.subr.bf16.mxu0 %v488
        %531 = vmatpush1.bf16.msra.mxu0 %v487
        %532 = vmatprep.subr.bf16.mxu0 %v491
        %533 = vmatpush1.bf16.msra.mxu0 %v490
        %534 = vmatprep.subr.bf16.mxu0 %v494
        %535 = vmatpush1.bf16.msra.mxu0 %v493
        %536 = vmatprep.subr.bf16.mxu0 0
        %537 = vmatpush1.bf16.msra.mxu0 0
        %538 = vmatprep.subr.bf16.mxu0 0
        %539 = vmatpush1.bf16.msra.mxu0 0
        %540 = vmatprep.subr.bf16.mxu0 0
        %541 = vmatpush1.bf16.msra.mxu0 0
        %542 = vmatprep.subr.bf16.mxu0 0
        %543 = vmatpush1.bf16.msra.mxu0 0
        %544 = vmatprep.subr.bf16.mxu0 0
        %545 = vmatpush1.bf16.msra.mxu0 0
        %546 = vmatprep.subr.bf16.mxu0 0
        %547 = vmatpush1.bf16.msra.mxu0 0
        %548 = vmatprep.subr.bf16.mxu0 0
        %549 = vmatpush1.bf16.msra.mxu0 0
        %550 = vmatprep.subr.bf16.mxu0 0
        %551 = vmatpush1.bf16.msra.mxu0 0
        %552 = vmatprep.mubr.bf16.mxu0 0
        %553 = vmatmul.mubr.bf16.gmra.mrb[0].mxu0 %v359
        %v554 = vpop.f32.mrb[0].mxu0
        %v555 = vadd.f32 0.0, %v554
        %v556 = vpop.f32.mrb[0].mxu0
        %v557 = vadd.f32 0.0, %v556
        %v558 = vpop.f32.mrb[0].mxu0
        %v559 = vpop.f32.mrb[0].mxu0
        %560 = vdwg.mxu0
        %561 = vmatprep.subr.bf16.mxu0 0
        %562 = vmatpush1.bf16.msra.mxu0 %v474
        %563 = vmatprep.subr.bf16.mxu0 0
        %564 = vmatpush1.bf16.msra.mxu0 %v477
        %565 = vmatprep.subr.bf16.mxu0 0
        %566 = vmatpush1.bf16.msra.mxu0 %v480
        %567 = vmatprep.subr.bf16.mxu0 0
        %568 = vmatpush1.bf16.msra.mxu0 %v483
        %569 = vmatprep.subr.bf16.mxu0 0
        %570 = vmatpush1.bf16.msra.mxu0 %v486
        %571 = vmatprep.subr.bf16.mxu0 0
        %572 = vmatpush1.bf16.msra.mxu0 %v489
        %573 = vmatprep.subr.bf16.mxu0 0
        %574 = vmatpush1.bf16.msra.mxu0 %v492
        %575 = vmatprep.subr.bf16.mxu0 0
        %576 = vmatpush1.bf16.msra.mxu0 %v495
        %577 = vmatprep.subr.bf16.mxu0 0
        %578 = vmatpush1.bf16.msra.mxu0 0
        %579 = vmatprep.subr.bf16.mxu0 0
        %580 = vmatpush1.bf16.msra.mxu0 0
        %581 = vmatprep.subr.bf16.mxu0 0
        %582 = vmatpush1.bf16.msra.mxu0 0
        %583 = vmatprep.subr.bf16.mxu0 0
        %584 = vmatpush1.bf16.msra.mxu0 0
        %585 = vmatprep.subr.bf16.mxu0 0
        %586 = vmatpush1.bf16.msra.mxu0 0
        %587 = vmatprep.subr.bf16.mxu0 0
        %588 = vmatpush1.bf16.msra.mxu0 0
        %589 = vmatprep.subr.bf16.mxu0 0
        %590 = vmatpush1.bf16.msra.mxu0 0
        %591 = vmatprep.subr.bf16.mxu0 0
        %592 = vmatpush1.bf16.msra.mxu0 0
        %593 = vmatprep.mubr.bf16.mxu0 0
        %594 = vmatmul.mubr.bf16.gmra.mrb[0].mxu0 %v359
        %v595 = vpop.f32.mrb[0].mxu0
        %v596 = vadd.f32 0.0, %v595
        %v597 = vpop.f32.mrb[0].mxu0
        %v598 = vpop.f32.mrb[0].mxu0
        %v599 = vpop.f32.mrb[0].mxu0
        %600 = vdwg.mxu0
        %v601 = vld [vmem:[%s6] sm:$0x1]
        %v602 = vlaneseq
        %v603 = vshrl.u32 %v602, 7
        %v604 = vsub.s32 0, %v603
        %v605 = vrot.slane %v601, %v604
        %v606 = vadd.f32 %v555, %v605
        %v607 = vld [vmem:[%s6 + $0x1] sm:$0x1]
        %v608 = vlaneseq
        %v609 = vshrl.u32 %v608, 7
        %v610 = vsub.s32 0, %v609
        %v611 = vrot.slane %v607, %v610
        %v612 = vadd.f32 %v557, %v611
        %v613 = vld [vmem:[%s6 + $0x2] sm:$0x1]
        %v614 = vlaneseq
        %v615 = vshrl.u32 %v614, 7
        %v616 = vsub.s32 0, %v615
        %v617 = vrot.slane %v613, %v616
        %v618 = vadd.f32 %v596, %v617
        %v619 = vpack.c.bf16 %v606, %v606
        %v620 = vpack.c.bf16 %v612, %v612
        %621 = vmatprep.subr.bf16.mxu0 0
        %622 = vmatpush1.bf16.xpose.msra.mxu0 %v620
        %623 = vmatprep.subr.bf16.mxu0 0
        %624 = vmatpush1.bf16.xpose.msra.mxu0 0
        %625 = vmatprep.subr.bf16.mxu0 0
        %626 = vmatpush1.bf16.xpose.msra.mxu0 0
        %627 = vmatprep.subr.bf16.mxu0 0
        %628 = vmatpush1.bf16.xpose.msra.mxu0 0
        %629 = vmatprep.subr.bf16.mxu0 0
        %630 = vmatpush1.bf16.xpose.msra.mxu0 0
        %631 = vmatprep.subr.bf16.mxu0 0
        %632 = vmatpush1.bf16.xpose.msra.mxu0 0
        %633 = vmatprep.subr.bf16.mxu0 0
        %634 = vmatpush1.bf16.xpose.msra.mxu0 0
        %635 = vmatprep.subr.bf16.mxu0 0
        %636 = vmatpush1.bf16.xpose.msra.mxu0 0
        %637 = vmatprep.subr.bf16.mxu0 0
        %638 = vmatpush1.bf16.xpose.msra.mxu0 0
        %639 = vmatprep.subr.bf16.mxu0 0
        %640 = vmatpush1.bf16.xpose.msra.mxu0 0
        %641 = vmatprep.subr.bf16.mxu0 0
        %642 = vmatpush1.bf16.xpose.msra.mxu0 0
        %643 = vmatprep.subr.bf16.mxu0 0
        %644 = vmatpush1.bf16.xpose.msra.mxu0 0
        %645 = vmatprep.subr.bf16.mxu0 0
        %646 = vmatpush1.bf16.xpose.msra.mxu0 0
        %647 = vmatprep.subr.bf16.mxu0 0
        %648 = vmatpush1.bf16.xpose.msra.mxu0 0
        %649 = vmatprep.subr.bf16.mxu0 0
        %650 = vmatpush1.bf16.xpose.msra.mxu0 0
        %651 = vmatprep.subr.bf16.mxu0 0
        %652 = vmatpush1.bf16.xpose.msra.mxu0 0
        %653 = vmatprep.mubr.bf16.mxu0 0
        %654 = vmatmul.mubr.bf16.gmra.mrb[0].mxu0 %v619
        %v655 = vpop.f32.mrb[0].mxu0
        %v656 = vadd.f32 0.0, %v655
        %v657 = vpop.f32.mrb[0].mxu0
        %v658 = vpop.f32.mrb[0].mxu0
        %v659 = vpop.f32.mrb[0].mxu0
        %660 = vdwg.mxu0
        %v661 = vmul.f32 %v656, 0.088388346
        %v662 = vld [vmem:[%s353] sm:$0x1]
        %v663 = vsub.f32 1.0, %v662
        %v664 = vmul.f32 %v663, -1e+09
        %v666 = vlaneseq
        %v667 = vshrl.u32 %v666, 7
        %v668 = vsub.s32 0, %v667
        %v669 = vrot.slane %v664, %v668
        %v671 = vadd.f32 %v661, %v669
        %vm672 = vcmask 64512
        %v673 = vsel %vm672, %v671, -inf
        %674 = vmax.xlane.f32.xlu0 %v673
        %v675 = vpop.xlane.xlu0 %674
        %v676 = vsub.f32 %v671, %v675
        %v677 = vmul.f32 %v676, 1.442695
        %v678 = vpow.pop %v677
        %v679 = vsel %vm672, %v678, 0.0
        %680 = vadd.xlane.f32.xlu0 %v679
        %v681 = vpop.xlane.xlu0 %680
        %v682 = vrcp.pop %v681
        %v683 = vmul.f32 %v678, %v682
        %v684 = vpack.c.bf16 %v683, %v683
        %v685 = vpack.c.bf16 %v618, %v618
        %v687 = vsel %vm672, %v684, 0
        %vm689 = vcmask 1043456
        %v691 = vsel %vm689, %v685, 0
        %693 = vmatprep.subr.bf16.mxu0 0
        %694 = vmatpush1.bf16.msra.mxu0 %v691
        %695 = vmatprep.subr.bf16.mxu0 0
        %696 = vmatpush1.bf16.msra.mxu0 0
        %697 = vmatprep.subr.bf16.mxu0 0
        %698 = vmatpush1.bf16.msra.mxu0 0
        %699 = vmatprep.subr.bf16.mxu0 0
        %700 = vmatpush1.bf16.msra.mxu0 0
        %701 = vmatprep.subr.bf16.mxu0 0
        %702 = vmatpush1.bf16.msra.mxu0 0
        %703 = vmatprep.subr.bf16.mxu0 0
        %704 = vmatpush1.bf16.msra.mxu0 0
        %705 = vmatprep.subr.bf16.mxu0 0
        %706 = vmatpush1.bf16.msra.mxu0 0
        %707 = vmatprep.subr.bf16.mxu0 0
        %708 = vmatpush1.bf16.msra.mxu0 0
        %709 = vmatprep.subr.bf16.mxu0 0
        %710 = vmatpush1.bf16.msra.mxu0 0
        %711 = vmatprep.subr.bf16.mxu0 0
        %712 = vmatpush1.bf16.msra.mxu0 0
        %713 = vmatprep.subr.bf16.mxu0 0
        %714 = vmatpush1.bf16.msra.mxu0 0
        %715 = vmatprep.subr.bf16.mxu0 0
        %716 = vmatpush1.bf16.msra.mxu0 0
        %717 = vmatprep.subr.bf16.mxu0 0
        %718 = vmatpush1.bf16.msra.mxu0 0
        %719 = vmatprep.subr.bf16.mxu0 0
        %720 = vmatpush1.bf16.msra.mxu0 0
        %721 = vmatprep.subr.bf16.mxu0 0
        %722 = vmatpush1.bf16.msra.mxu0 0
        %723 = vmatprep.subr.bf16.mxu0 0
        %724 = vmatpush1.bf16.msra.mxu0 0
        %725 = vmatprep.mubr.bf16.mxu0 0
        %726 = vmatmul.mubr.bf16.gmra.mrb[0].mxu0 %v687
        %v727 = vpop.f32.mrb[0].mxu0
        %v728 = vadd.f32 0.0, %v727
        %v729 = vpop.f32.mrb[0].mxu0
        %v730 = vpop.f32.mrb[0].mxu0
        %v731 = vpop.f32.mrb[0].mxu0
        %732 = vdwg.mxu0
        %v733 = vpack.c.bf16 %v728, %v728
        %v734 = vld [vmem:[#allocation2] sm:$0xf]
        %v735 = vld [vmem:[#allocation2 + $0x4] sm:$0xf]
        %v736 = vld [vmem:[#allocation2 + $0x8] sm:$0xf]
        %v737 = vld [vmem:[#allocation2 + $0xc] sm:$0xf]
        %v738 = vld [vmem:[#allocation2 + $0x10] sm:$0xf]
        %v739 = vld [vmem:[#allocation2 + $0x14] sm:$0xf]
        %v740 = vld [vmem:[#allocation2 + $0x18] sm:$0xf]
        %v741 = vld [vmem:[#allocation2 + $0x1c] sm:$0xf]
        %v742 = vld [vmem:[#allocation2 + $0x20] sm:$0xf]
        %v743 = vld [vmem:[#allocation2 + $0x24] sm:$0xf]
        %v744 = vld [vmem:[#allocation2 + $0x28] sm:$0xf]
        %v745 = vld [vmem:[#allocation2 + $0x2c] sm:$0xf]
        %v746 = vld [vmem:[#allocation2 + $0x30] sm:$0xf]
        %v747 = vld [vmem:[#allocation2 + $0x34] sm:$0xf]
        %v748 = vld [vmem:[#allocation2 + $0x38] sm:$0xf]
        %v749 = vld [vmem:[#allocation2 + $0x3c] sm:$0xf]
        %v750 = vld [vmem:[%s6 + $0x3] sm:$0x1]
        %v751 = vlaneseq
        %v752 = vshrl.u32 %v751, 7
        %v753 = vsub.s32 0, %v752
        %v754 = vrot.slane %v750, %v753
        %v771 = vunpack.c.l.b16 %v734
        %v772 = vunpack.c.l.b16 %v735
        %v773 = vunpack.c.l.b16 %v736
        %v774 = vunpack.c.l.b16 %v737
        %v775 = vunpack.c.l.b16 %v738
        %v776 = vunpack.c.l.b16 %v739
        %v777 = vunpack.c.l.b16 %v740
        %v778 = vunpack.c.l.b16 %v741
        %v779 = vunpack.c.l.b16 %v742
        %v780 = vunpack.c.l.b16 %v743
        %v781 = vunpack.c.l.b16 %v744
        %v782 = vunpack.c.l.b16 %v745
        %v783 = vunpack.c.l.b16 %v746
        %v784 = vunpack.c.l.b16 %v747
        %v785 = vunpack.c.l.b16 %v748
        %v786 = vunpack.c.l.b16 %v749
        %v787 = vpack.c.b16 %v772, %v771
        %v788 = vpack.c.b16 %v774, %v773
        %v789 = vpack.c.b16 %v776, %v775
        %v790 = vpack.c.b16 %v778, %v777
        %v791 = vpack.c.b16 %v780, %v779
        %v792 = vpack.c.b16 %v782, %v781
        %v793 = vpack.c.b16 %v784, %v783
        %v794 = vpack.c.b16 %v786, %v785
        %803 = vmatprep.subr.bf16.mxu0 0
        %804 = vmatpush1.bf16.msra.mxu0 %v787
        %805 = vmatprep.subr.bf16.mxu0 0
        %806 = vmatpush1.bf16.msra.mxu0 %v788
        %807 = vmatprep.subr.bf16.mxu0 0
        %808 = vmatpush1.bf16.msra.mxu0 %v789
        %809 = vmatprep.subr.bf16.mxu0 0
        %810 = vmatpush1.bf16.msra.mxu0 %v790
        %811 = vmatprep.subr.bf16.mxu0 0
        %812 = vmatpush1.bf16.msra.mxu0 %v791
        %813 = vmatprep.subr.bf16.mxu0 0
        %814 = vmatpush1.bf16.msra.mxu0 %v792
        %815 = vmatprep.subr.bf16.mxu0 0
        %816 = vmatpush1.bf16.msra.mxu0 %v793
        %817 = vmatprep.subr.bf16.mxu0 0
        %818 = vmatpush1.bf16.msra.mxu0 %v794
        %819 = vmatprep.subr.bf16.mxu0 0
        %820 = vmatpush1.bf16.msra.mxu0 0
        %821 = vmatprep.subr.bf16.mxu0 0
        %822 = vmatpush1.bf16.msra.mxu0 0
        %823 = vmatprep.subr.bf16.mxu0 0
        %824 = vmatpush1.bf16.msra.mxu0 0
        %825 = vmatprep.subr.bf16.mxu0 0
        %826 = vmatpush1.bf16.msra.mxu0 0
        %827 = vmatprep.subr.bf16.mxu0 0
        %828 = vmatpush1.bf16.msra.mxu0 0
        %829 = vmatprep.subr.bf16.mxu0 0
        %830 = vmatpush1.bf16.msra.mxu0 0
        %831 = vmatprep.subr.bf16.mxu0 0
        %832 = vmatpush1.bf16.msra.mxu0 0
        %833 = vmatprep.subr.bf16.mxu0 0
        %834 = vmatpush1.bf16.msra.mxu0 0
        %835 = vmatprep.mubr.bf16.mxu0 0
        %836 = vmatmul.mubr.bf16.gmra.mrb[0].mxu0 %v733
        %v837 = vpop.f32.mrb[0].mxu0
        %v838 = vadd.f32 %v754, %v837
        %v839 = vpop.f32.mrb[0].mxu0
        %v840 = vpop.f32.mrb[0].mxu0
        %v841 = vpop.f32.mrb[0].mxu0
        %842 = vdwg.mxu0
        %v843 = vadd.f32 %v358, %v838
        %v844 = vld [vmem:[%s6 + $0x4] sm:$0x1]
        %v845 = vld [vmem:[%s6 + $0x5] sm:$0x1]
        %846 = vadd.xlane.f32.xlu0 %v843
        %v847 = vpop.xlane.xlu0 %846
        %v848 = vrcp.pop 128.0
        %v849 = vmul.f32 %v847, %v848
        %v850 = vsub.f32 %v843, %v849
        %v851 = vmul.f32 %v850, %v850
        %852 = vadd.xlane.f32.xlu0 %v851
        %v853 = vpop.xlane.xlu0 %852
        %v854 = vmul.f32 %v853, %v848
        %v855 = vadd.f32 %v854, 1e-12
        %v856 = vrsqrt.pop %v855
        %v857 = vmul.f32 %v850, %v856
        %v858 = vlaneseq
        %v859 = vshrl.u32 %v858, 7
        %v860 = vsub.s32 0, %v859
        %v861 = vrot.slane %v844, %v860
        %v862 = vmul.f32 %v857, %v861
        %v863 = vlaneseq
        %v864 = vshrl.u32 %v863, 7
        %v865 = vsub.s32 0, %v864
        %v866 = vrot.slane %v845, %v865
        %v867 = vadd.f32 %v862, %v866
        %v868 = vpack.c.bf16 %v867, %v867
        %v869 = vld [vmem:[#allocation4] sm:$0xff]
        %v870 = vld [vmem:[#allocation4 + $0x8] sm:$0xff]
        %v871 = vld [vmem:[#allocation4 + $0x10] sm:$0xff]
        %v872 = vld [vmem:[#allocation4 + $0x18] sm:$0xff]
        %v873 = vld [vmem:[#allocation4 + $0x20] sm:$0xff]
        %v874 = vld [vmem:[#allocation4 + $0x28] sm:$0xff]
        %v875 = vld [vmem:[#allocation4 + $0x30] sm:$0xff]
        %v876 = vld [vmem:[#allocation4 + $0x38] sm:$0xff]
        %v877 = vld [vmem:[#allocation4 + $0x40] sm:$0xff]
        %v878 = vld [vmem:[#allocation4 + $0x48] sm:$0xff]
        %v879 = vld [vmem:[#allocation4 + $0x50] sm:$0xff]
        %v880 = vld [vmem:[#allocation4 + $0x58] sm:$0xff]
        %v881 = vld [vmem:[#allocation4 + $0x60] sm:$0xff]
        %v882 = vld [vmem:[#allocation4 + $0x68] sm:$0xff]
        %v883 = vld [vmem:[#allocation4 + $0x70] sm:$0xff]
        %v884 = vld [vmem:[#allocation4 + $0x78] sm:$0xff]
        %v885 = vld [vmem:[#allocation4 + $0x80] sm:$0xff]
        %v886 = vld [vmem:[#allocation4 + $0x88] sm:$0xff]
        %v887 = vld [vmem:[#allocation4 + $0x90] sm:$0xff]
        %v888 = vld [vmem:[#allocation4 + $0x98] sm:$0xff]
        %v889 = vld [vmem:[#allocation4 + $0xa0] sm:$0xff]
        %v890 = vld [vmem:[#allocation4 + $0xa8] sm:$0xff]
        %v891 = vld [vmem:[#allocation4 + $0xb0] sm:$0xff]
        %v892 = vld [vmem:[#allocation4 + $0xb8] sm:$0xff]
        %v893 = vld [vmem:[#allocation4 + $0xc0] sm:$0xff]
        %v894 = vld [vmem:[#allocation4 + $0xc8] sm:$0xff]
        %v895 = vld [vmem:[#allocation4 + $0xd0] sm:$0xff]
        %v896 = vld [vmem:[#allocation4 + $0xd8] sm:$0xff]
        %v897 = vld [vmem:[#allocation4 + $0xe0] sm:$0xff]
        %v898 = vld [vmem:[#allocation4 + $0xe8] sm:$0xff]
        %v899 = vld [vmem:[#allocation4 + $0xf0] sm:$0xff]
        %v900 = vld [vmem:[#allocation4 + $0xf8] sm:$0xff]
        %v901 = vld [vmem:[%s7] sm:$0xf]
        %v903 = vlaneseq
        %v904 = vshrl.u32 %v903, 7
        %v905 = vsub.s32 0, %v904
        %v906 = vrot.slane %v901, %v905
        %v907 = vlaneseq
        %v908 = vshrl.u32 %v907, 7
        %v909 = vsub.s32 1, %v908
        %v910 = vrot.slane %v901, %v909
        %v911 = vlaneseq
        %v912 = vshrl.u32 %v911, 7
        %v913 = vsub.s32 2, %v912
        %v914 = vrot.slane %v901, %v913
        %v915 = vlaneseq
        %v916 = vshrl.u32 %v915, 7
        %v917 = vsub.s32 3, %v916
        %v918 = vrot.slane %v901, %v917
        %v955 = vunpack.c.l.b16 %v869
        %v956 = vunpack.c.h.b16 %v869
        %v957 = vunpack.c.l.b16 %v870
        %v958 = vunpack.c.h.b16 %v870
        %v959 = vunpack.c.l.b16 %v871
        %v960 = vunpack.c.h.b16 %v871
        %v961 = vunpack.c.l.b16 %v872
        %v962 = vunpack.c.h.b16 %v872
        %v963 = vunpack.c.l.b16 %v873
        %v964 = vunpack.c.h.b16 %v873
        %v965 = vunpack.c.l.b16 %v874
        %v966 = vunpack.c.h.b16 %v874
        %v967 = vunpack.c.l.b16 %v875
        %v968 = vunpack.c.h.b16 %v875
        %v969 = vunpack.c.l.b16 %v876
        %v970 = vunpack.c.h.b16 %v876
        %v971 = vunpack.c.l.b16 %v877
        %v972 = vunpack.c.h.b16 %v877
        %v973 = vunpack.c.l.b16 %v878
        %v974 = vunpack.c.h.b16 %v878
        %v975 = vunpack.c.l.b16 %v879
        %v976 = vunpack.c.h.b16 %v879
        %v977 = vunpack.c.l.b16 %v880
        %v978 = vunpack.c.h.b16 %v880
        %v979 = vunpack.c.l.b16 %v881
        %v980 = vunpack.c.h.b16 %v881
        %v981 = vunpack.c.l.b16 %v882
        %v982 = vunpack.c.h.b16 %v882
        %v983 = vunpack.c.l.b16 %v883
        %v984 = vunpack.c.h.b16 %v883
        %v985 = vunpack.c.l.b16 %v884
        %v986 = vunpack.c.h.b16 %v884
        %v987 = vunpack.c.l.b16 %v885
        %v988 = vunpack.c.h.b16 %v885
        %v989 = vunpack.c.l.b16 %v886
        %v990 = vunpack.c.h.b16 %v886
        %v991 = vunpack.c.l.b16 %v887
        %v992 = vunpack.c.h.b16 %v887
        %v993 = vunpack.c.l.b16 %v888
        %v994 = vunpack.c.h.b16 %v888
        %v995 = vunpack.c.l.b16 %v889
        %v996 = vunpack.c.h.b16 %v889
        %v997 = vunpack.c.l.b16 %v890
        %v998 = vunpack.c.h.b16 %v890
        %v999 = vunpack.c.l.b16 %v891
        %v1000 = vunpack.c.h.b16 %v891
        %v1001 = vunpack.c.l.b16 %v892
        %v1002 = vunpack.c.h.b16 %v892
        %v1003 = vunpack.c.l.b16 %v893
        %v1004 = vunpack.c.h.b16 %v893
        %v1005 = vunpack.c.l.b16 %v894
        %v1006 = vunpack.c.h.b16 %v894
        %v1007 = vunpack.c.l.b16 %v895
        %v1008 = vunpack.c.h.b16 %v895
        %v1009 = vunpack.c.l.b16 %v896
        %v1010 = vunpack.c.h.b16 %v896
        %v1011 = vunpack.c.l.b16 %v897
        %v1012 = vunpack.c.h.b16 %v897
        %v1013 = vunpack.c.l.b16 %v898
        %v1014 = vunpack.c.h.b16 %v898
        %v1015 = vunpack.c.l.b16 %v899
        %v1016 = vunpack.c.h.b16 %v899
        %v1017 = vunpack.c.l.b16 %v900
        %v1018 = vunpack.c.h.b16 %v900
        %v1019 = vpack.c.b16 %v959, %v955
        %v1020 = vpack.c.b16 %v960, %v956
        %v1021 = vpack.c.b16 %v961, %v957
        %v1022 = vpack.c.b16 %v962, %v958
        %v1023 = vpack.c.b16 %v967, %v963
        %v1024 = vpack.c.b16 %v968, %v964
        %v1025 = vpack.c.b16 %v969, %v965
        %v1026 = vpack.c.b16 %v970, %v966
        %v1027 = vpack.c.b16 %v975, %v971
        %v1028 = vpack.c.b16 %v976, %v972
        %v1029 = vpack.c.b16 %v977, %v973
        %v1030 = vpack.c.b16 %v978, %v974
        %v1031 = vpack.c.b16 %v983, %v979
        %v1032 = vpack.c.b16 %v984, %v980
        %v1033 = vpack.c.b16 %v985, %v981
        %v1034 = vpack.c.b16 %v986, %v982
        %v1035 = vpack.c.b16 %v991, %v987
        %v1036 = vpack.c.b16 %v992, %v988
        %v1037 = vpack.c.b16 %v993, %v989
        %v1038 = vpack.c.b16 %v994, %v990
        %v1039 = vpack.c.b16 %v999, %v995
        %v1040 = vpack.c.b16 %v1000, %v996
        %v1041 = vpack.c.b16 %v1001, %v997
        %v1042 = vpack.c.b16 %v1002, %v998
        %v1043 = vpack.c.b16 %v1007, %v1003
        %v1044 = vpack.c.b16 %v1008, %v1004
        %v1045 = vpack.c.b16 %v1009, %v1005
        %v1046 = vpack.c.b16 %v1010, %v1006
        %v1047 = vpack.c.b16 %v1015, %v1011
        %v1048 = vpack.c.b16 %v1016, %v1012
        %v1049 = vpack.c.b16 %v1017, %v1013
        %v1050 = vpack.c.b16 %v1018, %v1014
        %1083 = vmatprep.subr.bf16.mxu0 %v1020
        %1084 = vmatpush1.bf16.msra.mxu0 %v1019
        %1085 = vmatprep.subr.bf16.mxu0 %v1024
        %1086 = vmatpush1.bf16.msra.mxu0 %v1023
        %1087 = vmatprep.subr.bf16.mxu0 %v1028
        %1088 = vmatpush1.bf16.msra.mxu0 %v1027
        %1089 = vmatprep.subr.bf16.mxu0 %v1032
        %1090 = vmatpush1.bf16.msra.mxu0 %v1031
        %1091 = vmatprep.subr.bf16.mxu0 %v1036
        %1092 = vmatpush1.bf16.msra.mxu0 %v1035
        %1093 = vmatprep.subr.bf16.mxu0 %v1040
        %1094 = vmatpush1.bf16.msra.mxu0 %v1039
        %1095 = vmatprep.subr.bf16.mxu0 %v1044
        %1096 = vmatpush1.bf16.msra.mxu0 %v1043
        %1097 = vmatprep.subr.bf16.mxu0 %v1048
        %1098 = vmatpush1.bf16.msra.mxu0 %v1047
        %1099 = vmatprep.subr.bf16.mxu0 0
        %1100 = vmatpush1.bf16.msra.mxu0 0
        %1101 = vmatprep.subr.bf16.mxu0 0
        %1102 = vmatpush1.bf16.msra.mxu0 0
        %1103 = vmatprep.subr.bf16.mxu0 0
        %1104 = vmatpush1.bf16.msra.mxu0 0
        %1105 = vmatprep.subr.bf16.mxu0 0
        %1106 = vmatpush1.bf16.msra.mxu0 0
        %1107 = vmatprep.subr.bf16.mxu0 0
        %1108 = vmatpush1.bf16.msra.mxu0 0
        %1109 = vmatprep.subr.bf16.mxu0 0
        %1110 = vmatpush1.bf16.msra.mxu0 0
        %1111 = vmatprep.subr.bf16.mxu0 0
        %1112 = vmatpush1.bf16.msra.mxu0 0
        %1113 = vmatprep.subr.bf16.mxu0 0
        %1114 = vmatpush1.bf16.msra.mxu0 0
        %1115 = vmatprep.mubr.bf16.mxu0 0
        %1116 = vmatmul.mubr.bf16.gmra.mrb[0].mxu0 %v868
        %v1117 = vpop.f32.mrb[0].mxu0
        %v1118 = vadd.f32 %v906, %v1117
        %v1119 = vpop.f32.mrb[0].mxu0
        %v1120 = vadd.f32 %v910, %v1119
        %v1121 = vpop.f32.mrb[0].mxu0
        %v1122 = vpop.f32.mrb[0].mxu0
        %1123 = vdwg.mxu0
        %1124 = vmatprep.subr.bf16.mxu0 %v1022
        %1125 = vmatpush1.bf16.msra.mxu0 %v1021
        %1126 = vmatprep.subr.bf16.mxu0 %v1026
        %1127 = vmatpush1.bf16.msra.mxu0 %v1025
        %1128 = vmatprep.subr.bf16.mxu0 %v1030
        %1129 = vmatpush1.bf16.msra.mxu0 %v1029
        %1130 = vmatprep.subr.bf16.mxu0 %v1034
        %1131 = vmatpush1.bf16.msra.mxu0 %v1033
        %1132 = vmatprep.subr.bf16.mxu0 %v1038
        %1133 = vmatpush1.bf16.msra.mxu0 %v1037
        %1134 = vmatprep.subr.bf16.mxu0 %v1042
        %1135 = vmatpush1.bf16.msra.mxu0 %v1041
        %1136 = vmatprep.subr.bf16.mxu0 %v1046
        %1137 = vmatpush1.bf16.msra.mxu0 %v1045
        %1138 = vmatprep.subr.bf16.mxu0 %v1050
        %1139 = vmatpush1.bf16.msra.mxu0 %v1049
        %1140 = vmatprep.subr.bf16.mxu0 0
        %1141 = vmatpush1.bf16.msra.mxu0 0
        %1142 = vmatprep.subr.bf16.mxu0 0
        %1143 = vmatpush1.bf16.msra.mxu0 0
        %1144 = vmatprep.subr.bf16.mxu0 0
        %1145 = vmatpush1.bf16.msra.mxu0 0
        %1146 = vmatprep.subr.bf16.mxu0 0
        %1147 = vmatpush1.bf16.msra.mxu0 0
        %1148 = vmatprep.subr.bf16.mxu0 0
        %1149 = vmatpush1.bf16.msra.mxu0 0
        %1150 = vmatprep.subr.bf16.mxu0 0
        %1151 = vmatpush1.bf16.msra.mxu0 0
        %1152 = vmatprep.subr.bf16.mxu0 0
        %1153 = vmatpush1.bf16.msra.mxu0 0
        %1154 = vmatprep.subr.bf16.mxu0 0
        %1155 = vmatpush1.bf16.msra.mxu0 0
        %1156 = vmatprep.mubr.bf16.mxu0 0
        %1157 = vmatmul.mubr.bf16.gmra.mrb[0].mxu0 %v868
        %v1158 = vpop.f32.mrb[0].mxu0
        %v1159 = vadd.f32 %v914, %v1158
        %v1160 = vpop.f32.mrb[0].mxu0
        %v1161 = vadd.f32 %v918, %v1160
        %v1162 = vpop.f32.mrb[0].mxu0
        %v1163 = vpop.f32.mrb[0].mxu0
        %1164 = vdwg.mxu0
        %v1165 = vmul.f32 %v1118, %v1118
        %v1166 = vmul.f32 %v1120, %v1120
        %v1167 = vmul.f32 %v1159, %v1159
        %v1168 = vmul.f32 %v1161, %v1161
        %v1169 = vmul.f32 %v1118, %v1165
        %v1170 = vmul.f32 %v1120, %v1166
        %v1171 = vmul.f32 %v1159, %v1167
        %v1172 = vmul.f32 %v1161, %v1168
        %v1173 = vmul.f32 %v1169, 0.044715
        %v1174 = vmul.f32 %v1170, 0.044715
        %v1175 = vmul.f32 %v1171, 0.044715
        %v1176 = vmul.f32 %v1172, 0.044715
        %v1177 = vadd.f32 %v1118, %v1173
        %v1178 = vadd.f32 %v1120, %v1174
        %v1179 = vadd.f32 %v1159, %v1175
        %v1180 = vadd.f32 %v1161, %v1176
        %v1181 = vmul.f32 %v1177, 0.7978846
        %v1182 = vmul.f32 %v1178, 0.7978846
        %v1183 = vmul.f32 %v1179, 0.7978846
        %v1184 = vmul.f32 %v1180, 0.7978846
        %v1185 = vtanh.pop %v1181
        %v1186 = vtanh.pop %v1182
        %v1187 = vtanh.pop %v1183
        %v1188 = vtanh.pop %v1184
        %v1189 = vadd.f32 %v1185, 1.0
        %v1190 = vadd.f32 %v1186, 1.0
        %v1191 = vadd.f32 %v1187, 1.0
        %v1192 = vadd.f32 %v1188, 1.0
        %v1193 = vmul.f32 %v1189, 0.5
        %v1194 = vmul.f32 %v1190, 0.5
        %v1195 = vmul.f32 %v1191, 0.5
        %v1196 = vmul.f32 %v1192, 0.5
        %v1197 = vmul.f32 %v1118, %v1193
        %v1198 = vmul.f32 %v1120, %v1194
        %v1199 = vmul.f32 %v1159, %v1195
        %v1200 = vmul.f32 %v1161, %v1196
        %v1201 = vpack.c.bf16 %v1197, %v1197
        %v1202 = vpack.c.bf16 %v1198, %v1198
        %v1203 = vpack.c.bf16 %v1199, %v1199
        %v1204 = vpack.c.bf16 %v1200, %v1200
        %v1205 = vld [vmem:[#allocation6] sm:$0xf]
        %v1206 = vld [vmem:[#allocation6 + $0x4] sm:$0xf]
        %v1207 = vld [vmem:[#allocation6 + $0x8] sm:$0xf]
        %v1208 = vld [vmem:[#allocation6 + $0xc] sm:$0xf]
        %v1209 = vld [vmem:[#allocation6 + $0x10] sm:$0xf]
        %v1210 = vld [vmem:[#allocation6 + $0x14] sm:$0xf]
        %v1211 = vld [vmem:[#allocation6 + $0x18] sm:$0xf]
        %v1212 = vld [vmem:[#allocation6 + $0x1c] sm:$0xf]
        %v1213 = vld [vmem:[#allocation6 + $0x20] sm:$0xf]
        %v1214 = vld [vmem:[#allocation6 + $0x24] sm:$0xf]
        %v1215 = vld [vmem:[#allocation6 + $0x28] sm:$0xf]
        %v1216 = vld [vmem:[#allocation6 + $0x2c] sm:$0xf]
        %v1217 = vld [vmem:[#allocation6 + $0x30] sm:$0xf]
        %v1218 = vld [vmem:[#allocation6 + $0x34] sm:$0xf]
        %v1219 = vld [vmem:[#allocation6 + $0x38] sm:$0xf]
        %v1220 = vld [vmem:[#allocation6 + $0x3c] sm:$0xf]
        %v1221 = vld [vmem:[#allocation6 + $0x40] sm:$0xf]
        %v1222 = vld [vmem:[#allocation6 + $0x44] sm:$0xf]
        %v1223 = vld [vmem:[#allocation6 + $0x48] sm:$0xf]
        %v1224 = vld [vmem:[#allocation6 + $0x4c] sm:$0xf]
        %v1225 = vld [vmem:[#allocation6 + $0x50] sm:$0xf]
        %v1226 = vld [vmem:[#allocation6 + $0x54] sm:$0xf]
        %v1227 = vld [vmem:[#allocation6 + $0x58] sm:$0xf]
        %v1228 = vld [vmem:[#allocation6 + $0x5c] sm:$0xf]
        %v1229 = vld [vmem:[#allocation6 + $0x60] sm:$0xf]
        %v1230 = vld [vmem:[#allocation6 + $0x64] sm:$0xf]
        %v1231 = vld [vmem:[#allocation6 + $0x68] sm:$0xf]
        %v1232 = vld [vmem:[#allocation6 + $0x6c] sm:$0xf]
        %v1233 = vld [vmem:[#allocation6 + $0x70] sm:$0xf]
        %v1234 = vld [vmem:[#allocation6 + $0x74] sm:$0xf]
        %v1235 = vld [vmem:[#allocation6 + $0x78] sm:$0xf]
        %v1236 = vld [vmem:[#allocation6 + $0x7c] sm:$0xf]
        %v1237 = vld [vmem:[#allocation6 + $0x80] sm:$0xf]
        %v1238 = vld [vmem:[#allocation6 + $0x84] sm:$0xf]
        %v1239 = vld [vmem:[#allocation6 + $0x88] sm:$0xf]
        %v1240 = vld [vmem:[#allocation6 + $0x8c] sm:$0xf]
        %v1241 = vld [vmem:[#allocation6 + $0x90] sm:$0xf]
        %v1242 = vld [vmem:[#allocation6 + $0x94] sm:$0xf]
        %v1243 = vld [vmem:[#allocation6 + $0x98] sm:$0xf]
        %v1244 = vld [vmem:[#allocation6 + $0x9c] sm:$0xf]
        %v1245 = vld [vmem:[#allocation6 + $0xa0] sm:$0xf]
        %v1246 = vld [vmem:[#allocation6 + $0xa4] sm:$0xf]
        %v1247 = vld [vmem:[#allocation6 + $0xa8] sm:$0xf]
        %v1248 = vld [vmem:[#allocation6 + $0xac] sm:$0xf]
        %v1249 = vld [vmem:[#allocation6 + $0xb0] sm:$0xf]
        %v1250 = vld [vmem:[#allocation6 + $0xb4] sm:$0xf]
        %v1251 = vld [vmem:[#allocation6 + $0xb8] sm:$0xf]
        %v1252 = vld [vmem:[#allocation6 + $0xbc] sm:$0xf]
        %v1253 = vld [vmem:[#allocation6 + $0xc0] sm:$0xf]
        %v1254 = vld [vmem:[#allocation6 + $0xc4] sm:$0xf]
        %v1255 = vld [vmem:[#allocation6 + $0xc8] sm:$0xf]
        %v1256 = vld [vmem:[#allocation6 + $0xcc] sm:$0xf]
        %v1257 = vld [vmem:[#allocation6 + $0xd0] sm:$0xf]
        %v1258 = vld [vmem:[#allocation6 + $0xd4] sm:$0xf]
        %v1259 = vld [vmem:[#allocation6 + $0xd8] sm:$0xf]
        %v1260 = vld [vmem:[#allocation6 + $0xdc] sm:$0xf]
        %v1261 = vld [vmem:[#allocation6 + $0xe0] sm:$0xf]
        %v1262 = vld [vmem:[#allocation6 + $0xe4] sm:$0xf]
        %v1263 = vld [vmem:[#allocation6 + $0xe8] sm:$0xf]
        %v1264 = vld [vmem:[#allocation6 + $0xec] sm:$0xf]
        %v1265 = vld [vmem:[#allocation6 + $0xf0] sm:$0xf]
        %v1266 = vld [vmem:[#allocation6 + $0xf4] sm:$0xf]
        %v1267 = vld [vmem:[#allocation6 + $0xf8] sm:$0xf]
        %v1268 = vld [vmem:[#allocation6 + $0xfc] sm:$0xf]
        %v1269 = vld [vmem:[%s6 + $0x6] sm:$0x1]
        %v1270 = vlaneseq
        %v1271 = vshrl.u32 %v1270, 7
        %v1272 = vsub.s32 0, %v1271
        %v1273 = vrot.slane %v1269, %v1272
        %v1338 = vunpack.c.l.b16 %v1205
        %v1339 = vunpack.c.l.b16 %v1206
        %v1340 = vunpack.c.l.b16 %v1207
        %v1341 = vunpack.c.l.b16 %v1208
        %v1342 = vunpack.c.l.b16 %v1209
        %v1343 = vunpack.c.l.b16 %v1210
        %v1344 = vunpack.c.l.b16 %v1211
        %v1345 = vunpack.c.l.b16 %v1212
        %v1346 = vunpack.c.l.b16 %v1213
        %v1347 = vunpack.c.l.b16 %v1214
        %v1348 = vunpack.c.l.b16 %v1215
        %v1349 = vunpack.c.l.b16 %v1216
        %v1350 = vunpack.c.l.b16 %v1217
        %v1351 = vunpack.c.l.b16 %v1218
        %v1352 = vunpack.c.l.b16 %v1219
        %v1353 = vunpack.c.l.b16 %v1220
        %v1354 = vunpack.c.l.b16 %v1221
        %v1355 = vunpack.c.l.b16 %v1222
        %v1356 = vunpack.c.l.b16 %v1223
        %v1357 = vunpack.c.l.b16 %v1224
        %v1358 = vunpack.c.l.b16 %v1225
        %v1359 = vunpack.c.l.b16 %v1226
        %v1360 = vunpack.c.l.b16 %v1227
        %v1361 = vunpack.c.l.b16 %v1228
        %v1362 = vunpack.c.l.b16 %v1229
        %v1363 = vunpack.c.l.b16 %v1230
        %v1364 = vunpack.c.l.b16 %v1231
        %v1365 = vunpack.c.l.b16 %v1232
        %v1366 = vunpack.c.l.b16 %v1233
        %v1367 = vunpack.c.l.b16 %v1234
        %v1368 = vunpack.c.l.b16 %v1235
        %v1369 = vunpack.c.l.b16 %v1236
        %v1370 = vunpack.c.l.b16 %v1237
        %v1371 = vunpack.c.l.b16 %v1238
        %v1372 = vunpack.c.l.b16 %v1239
        %v1373 = vunpack.c.l.b16 %v1240
        %v1374 = vunpack.c.l.b16 %v1241
        %v1375 = vunpack.c.l.b16 %v1242
        %v1376 = vunpack.c.l.b16 %v1243
        %v1377 = vunpack.c.l.b16 %v1244
        %v1378 = vunpack.c.l.b16 %v1245
        %v1379 = vunpack.c.l.b16 %v1246
        %v1380 = vunpack.c.l.b16 %v1247
        %v1381 = vunpack.c.l.b16 %v1248
        %v1382 = vunpack.c.l.b16 %v1249
        %v1383 = vunpack.c.l.b16 %v1250
        %v1384 = vunpack.c.l.b16 %v1251
        %v1385 = vunpack.c.l.b16 %v1252
        %v1386 = vunpack.c.l.b16 %v1253
        %v1387 = vunpack.c.l.b16 %v1254
        %v1388 = vunpack.c.l.b16 %v1255
        %v1389 = vunpack.c.l.b16 %v1256
        %v1390 = vunpack.c.l.b16 %v1257
        %v1391 = vunpack.c.l.b16 %v1258
        %v1392 = vunpack.c.l.b16 %v1259
        %v1393 = vunpack.c.l.b16 %v1260
        %v1394 = vunpack.c.l.b16 %v1261
        %v1395 = vunpack.c.l.b16 %v1262
        %v1396 = vunpack.c.l.b16 %v1263
        %v1397 = vunpack.c.l.b16 %v1264
        %v1398 = vunpack.c.l.b16 %v1265
        %v1399 = vunpack.c.l.b16 %v1266
        %v1400 = vunpack.c.l.b16 %v1267
        %v1401 = vunpack.c.l.b16 %v1268
        %v1402 = vpack.c.b16 %v1339, %v1338
        %v1403 = vpack.c.b16 %v1341, %v1340
        %v1404 = vpack.c.b16 %v1343, %v1342
        %v1405 = vpack.c.b16 %v1345, %v1344
        %v1406 = vpack.c.b16 %v1347, %v1346
        %v1407 = vpack.c.b16 %v1349, %v1348
        %v1408 = vpack.c.b16 %v1351, %v1350
        %v1409 = vpack.c.b16 %v1353, %v1352
        %v1410 = vpack.c.b16 %v1355, %v1354
        %v1411 = vpack.c.b16 %v1357, %v1356
        %v1412 = vpack.c.b16 %v1359, %v1358
        %v1413 = vpack.c.b16 %v1361, %v1360
        %v1414 = vpack.c.b16 %v1363, %v1362
        %v1415 = vpack.c.b16 %v1365, %v1364
        %v1416 = vpack.c.b16 %v1367, %v1366
        %v1417 = vpack.c.b16 %v1369, %v1368
        %v1418 = vpack.c.b16 %v1371, %v1370
        %v1419 = vpack.c.b16 %v1373, %v1372
        %v1420 = vpack.c.b16 %v1375, %v1374
        %v1421 = vpack.c.b16 %v1377, %v1376
        %v1422 = vpack.c.b16 %v1379, %v1378
        %v1423 = vpack.c.b16 %v1381, %v1380
        %v1424 = vpack.c.b16 %v1383, %v1382
        %v1425 = vpack.c.b16 %v1385, %v1384
        %v1426 = vpack.c.b16 %v1387, %v1386
        %v1427 = vpack.c.b16 %v1389, %v1388
        %v1428 = vpack.c.b16 %v1391, %v1390
        %v1429 = vpack.c.b16 %v1393, %v1392
        %v1430 = vpack.c.b16 %v1395, %v1394
        %v1431 = vpack.c.b16 %v1397, %v1396
        %v1432 = vpack.c.b16 %v1399, %v1398
        %v1433 = vpack.c.b16 %v1401, %v1400
        %1466 = vmatprep.subr.bf16.mxu0 0
        %1467 = vmatpush1.bf16.msra.mxu0 %v1402
        %1468 = vmatprep.subr.bf16.mxu0 0
        %1469 = vmatpush1.bf16.msra.mxu0 %v1403
        %1470 = vmatprep.subr.bf16.mxu0 0
        %1471 = vmatpush1.bf16.msra.mxu0 %v1404
        %1472 = vmatprep.subr.bf16.mxu0 0
        %1473 = vmatpush1.bf16.msra.mxu0 %v1405
        %1474 = vmatprep.subr.bf16.mxu0 0
        %1475 = vmatpush1.bf16.msra.mxu0 %v1406
        %1476 = vmatprep.subr.bf16.mxu0 0
        %1477 = vmatpush1.bf16.msra.mxu0 %v1407
        %1478 = vmatprep.subr.bf16.mxu0 0
        %1479 = vmatpush1.bf16.msra.mxu0 %v1408
        %1480 = vmatprep.subr.bf16.mxu0 0
        %1481 = vmatpush1.bf16.msra.mxu0 %v1409
        %1482 = vmatprep.subr.bf16.mxu0 0
        %1483 = vmatpush1.bf16.msra.mxu0 %v1410
        %1484 = vmatprep.subr.bf16.mxu0 0
        %1485 = vmatpush1.bf16.msra.mxu0 %v1411
        %1486 = vmatprep.subr.bf16.mxu0 0
        %1487 = vmatpush1.bf16.msra.mxu0 %v1412
        %1488 = vmatprep.subr.bf16.mxu0 0
        %1489 = vmatpush1.bf16.msra.mxu0 %v1413
        %1490 = vmatprep.subr.bf16.mxu0 0
        %1491 = vmatpush1.bf16.msra.mxu0 %v1414
        %1492 = vmatprep.subr.bf16.mxu0 0
        %1493 = vmatpush1.bf16.msra.mxu0 %v1415
        %1494 = vmatprep.subr.bf16.mxu0 0
        %1495 = vmatpush1.bf16.msra.mxu0 %v1416
        %1496 = vmatprep.subr.bf16.mxu0 0
        %1497 = vmatpush1.bf16.msra.mxu0 %v1417
        %1498 = vmatprep.mubr.bf16.mxu0 %v1202
        %1499 = vmatmul.mubr.bf16.gmra.mrb[0].mxu0 %v1201
        %v1500 = vpop.f32.mrb[0].mxu0
        %v1501 = vadd.f32 %v1273, %v1500
        %v1502 = vpop.f32.mrb[0].mxu0
        %v1503 = vpop.f32.mrb[0].mxu0
        %v1504 = vpop.f32.mrb[0].mxu0
        %1505 = vdwg.mxu0
        %1506 = vmatprep.subr.bf16.mxu0 0
        %1507 = vmatpush1.bf16.msra.mxu0 %v1418
        %1508 = vmatprep.subr.bf16.mxu0 0
        %1509 = vmatpush1.bf16.msra.mxu0 %v1419
        %1510 = vmatprep.subr.bf16.mxu0 0
        %1511 = vmatpush1.bf16.msra.mxu0 %v1420
        %1512 = vmatprep.subr.bf16.mxu0 0
        %1513 = vmatpush1.bf16.msra.mxu0 %v1421
        %1514 = vmatprep.subr.bf16.mxu0 0
        %1515 = vmatpush1.bf16.msra.mxu0 %v1422
        %1516 = vmatprep.subr.bf16.mxu0 0
        %1517 = vmatpush1.bf16.msra.mxu0 %v1423
        %1518 = vmatprep.subr.bf16.mxu0 0
        %1519 = vmatpush1.bf16.msra.mxu0 %v1424
        %1520 = vmatprep.subr.bf16.mxu0 0
        %1521 = vmatpush1.bf16.msra.mxu0 %v1425
        %1522 = vmatprep.subr.bf16.mxu0 0
        %1523 = vmatpush1.bf16.msra.mxu0 %v1426
        %1524 = vmatprep.subr.bf16.mxu0 0
        %1525 = vmatpush1.bf16.msra.mxu0 %v1427
        %1526 = vmatprep.subr.bf16.mxu0 0
        %1527 = vmatpush1.bf16.msra.mxu0 %v1428
        %1528 = vmatprep.subr.bf16.mxu0 0
        %1529 = vmatpush1.bf16.msra.mxu0 %v1429
        %1530 = vmatprep.subr.bf16.mxu0 0
        %1531 = vmatpush1.bf16.msra.mxu0 %v1430
        %1532 = vmatprep.subr.bf16.mxu0 0
        %1533 = vmatpush1.bf16.msra.mxu0 %v1431
        %1534 = vmatprep.subr.bf16.mxu0 0
        %1535 = vmatpush1.bf16.msra.mxu0 %v1432
        %1536 = vmatprep.subr.bf16.mxu0 0
        %1537 = vmatpush1.bf16.msra.mxu0 %v1433
        %1538 = vmatprep.mubr.bf16.mxu0 %v1204
        %1539 = vmatmul.mubr.bf16.gmra.mrb[0].mxu0 %v1203
        %v1540 = vpop.f32.mrb[0].mxu0
        %v1541 = vadd.f32 %v1501, %v1540
        %v1542 = vpop.f32.mrb[0].mxu0
        %v1543 = vpop.f32.mrb[0].mxu0
        %v1544 = vpop.f32.mrb[0].mxu0
        %1545 = vdwg.mxu0
        %v1546 = vadd.f32 %v867, %v1541
        %v1547 = vld [vmem:[%s6 + $0x7] sm:$0x1]
        %v1548 = vld [vmem:[%s6 + $0x8] sm:$0x1]
        %1549 = vadd.xlane.f32.xlu0 %v1546
        %v1550 = vpop.xlane.xlu0 %1549
        %v1551 = vmul.f32 %v1550, %v848
        %v1552 = vsub.f32 %v1546, %v1551
        %v1553 = vmul.f32 %v1552, %v1552
        %1554 = vadd.xlane.f32.xlu0 %v1553
        %v1555 = vpop.xlane.xlu0 %1554
        %v1556 = vmul.f32 %v1555, %v848
        %v1557 = vadd.f32 %v1556, 1e-12
        %v1558 = vrsqrt.pop %v1557
        %v1559 = vmul.f32 %v1552, %v1558
        %v1560 = vlaneseq
        %v1561 = vshrl.u32 %v1560, 7
        %v1562 = vsub.s32 0, %v1561
        %v1563 = vrot.slane %v1547, %v1562
        %v1564 = vmul.f32 %v1559, %v1563
        %v1565 = vlaneseq
        %v1566 = vshrl.u32 %v1565, 7
        %v1567 = vsub.s32 0, %v1566
        %v1568 = vrot.slane %v1548, %v1567
        %v1569 = vadd.f32 %v1564, %v1568
        %v1570 = vld [vmem:[%s6 + $0x9] sm:$0x1]
        %v1571 = vmul.f32 %v1569, %v1570
        %vm1572 = vcmask 1040384
        %v1573 = vsel %vm1572, %v1571, 0.0
        %1574 = vadd.xlane.f32.xlu0 %v1573
        %v1575 = vpop.xlane.xlu0 %1574
        %v1576 = vld [vmem:[%s6 + $0xa] sm:$0x1]
        %v1577 = vadd.f32 %v1575, %v1576
        %1579 = vset.pattern.permute.xlu0 0
        %1580 = vperm.xlu0 %1579, %v1577
        %v1581 = vpop.permute.xlu0 %1580
        %1583 = vst [vmem:[%s356] sm:$0x1] %v1581
        %p1584 = scmp.lt.s32.totalorder %s21, 1
        %s1585 = scalar_select %p1584, %s21, 1
        %s1586 = scalar_lea.vmem %s8, %s1585
        // Predicated region
        $region65: #{finbert_regressor_forward.1} parent=51 // pred_check
          %p1587 = pneg %p217
        $region66: #{finbert_regressor_forward.1} parent=51 // pred_check_branch
          %1589 = sbr.rel (%p1587) target = $region68
        $region67: #{finbert_regressor_forward.1} parent=51 // pred_region
          _
        $region68: #{finbert_regressor_forward.1} parent=51 // pred_fallthru
          _
      $region52: #{finbert_regressor_forward.1} parent=5 // pred_fallthru
        _
      %p1590 = scmp.le.s32.totalorder 2, %s16
      // Predicated region
      $region69: #{finbert_regressor_forward.1} parent=5 // pred_check
        %p1591 = pneg %p1590
      $region70: #{finbert_regressor_forward.1} parent=5 // pred_check_branch
        %1593 = sbr.rel (%p1591) target = $region72
      $region71: #{finbert_regressor_forward.1} parent=5 // pred_region
        %s1594 = ssub.s32 %s16, 2
        // Predicated region
        $region73: #{finbert_regressor_forward.1} parent=71 // pred_check
          %p1595 = pneg %p223
        $region74: #{finbert_regressor_forward.1} parent=71 // pred_check_branch
          %1597 = sbr.rel (%p1595) target = $region76
        $region75: #{finbert_regressor_forward.1} parent=71 // pred_region
          %p1598 = scmp.lt.s32.totalorder %s22, 1
          %s1599 = scalar_select %p1598, %s22, 1
          %s1600 = scalar_lea.vmem %s8, %s1599
        $region76: #{finbert_regressor_forward.1} parent=71 // pred_fallthru
          _
      $region72: #{finbert_regressor_forward.1} parent=5 // pred_fallthru
        _
    $region6: #{finbert_regressor_forward.1} parent=1 // loop_footer
      %s20 = sadd.s32 1, %s16
    $region7: #{finbert_regressor_forward.1} parent=1 // loop_footer_branch
      %15 = sbr.rel target = $region3
    $region8: #{finbert_regressor_forward.1} parent=1 // loop_exit
      _
    %1601 = vsyncpa [#allocation3], 1
    %s1602 = scalar_lea.sflag [#allocation3], 1
    %1603 = vsyncpa %s1602, 1
    %1604 = vsyncpa [#allocation5], 1

</llo_original>
